<compile_context>
chip_gen: v6e
topology: v6e:2x2x1
jax: 0.10.0
libtpu: 0.0.40
codegen_flags: <defaults>
</compile_context>

<pallas_src>
import jax
import jax.numpy as jnp
import numpy as np
from jax.experimental import pallas as pl
from jax.experimental.pallas import tpu as pltpu

DTYPE = jnp.float32
_MAX_BLEND_TILE = 2048          # multiple of 128; keeps (P+NB+2B)*TILE*4*2 well under VMEM


# --------------------------- Pallas kernels ---------------------------------

def _blend_kernel(beta_ref, sd_ref, tmpl_ref, lrot_ref, pd_ref, out_ref):
    # v_posed_flat = beta @ shapedirs + v_template + lrotmin @ posedirs
    # All arrays are coordinate-major over the lane axis (tile of 3*Vp).
    out_ref[...] = (
        jnp.dot(beta_ref[...], sd_ref[...], preferred_element_type=jnp.float32)
        + tmpl_ref[...]
        + jnp.dot(lrot_ref[...], pd_ref[...], preferred_element_type=jnp.float32)
    )


def blend_shapes(beta, sd_flat, tmpl_flat, lrotmin, pd_flat):
    B, NB = beta.shape
    P = lrotmin.shape[1]
    V3 = sd_flat.shape[1]                      # == 3 * Vp (Vp multiple of 128)
    tile = V3 if V3 <= _MAX_BLEND_TILE else _MAX_BLEND_TILE
    grid = (pl.cdiv(V3, tile),)
    return pl.pallas_call(
        _blend_kernel,
        out_shape=jax.ShapeDtypeStruct((B, V3), DTYPE),
        grid=grid,
        in_specs=[pl.BlockSpec((B, NB), lambda i: (0, 0)),
                  pl.BlockSpec((NB, tile), lambda i: (0, i)),
                  pl.BlockSpec((1, tile), lambda i: (0, i)),
                  pl.BlockSpec((B, P), lambda i: (0, 0)),
                  pl.BlockSpec((P, tile), lambda i: (0, i))],
        out_specs=pl.BlockSpec((B, tile), lambda i: (0, i)),
        compiler_params=pltpu.CompilerParams(dimension_semantics=("parallel",)),
    )(beta, sd_flat, tmpl_flat, lrotmin, pd_flat)


def _skin_kernel(wt_ref, gt_ref, rest_ref, jret_ref, off_ref,
                 vout_ref, jout_ref):
    # T^T = G_flat^T @ W^T : (16, J) x (J, Vp) -> (16, Vp), V on lanes.
    # result_t[i, :] = sum_k T^T[4i+k, :] * rest_h^T[k, :] + offset[b, i]
    # joints_t       = result_t @ J_regressor^T  (fused posed-joint regression)
    b = pl.program_id(0)
    Tt = jnp.dot(gt_ref[0], wt_ref[...], preferred_element_type=jnp.float32)  # (16, Vp)
    r = rest_ref[0]                                                           # (3, Vp)
    rows = []
    for i in range(3):
        vi = (Tt[4 * i + 0:4 * i + 1, :] * r[0:1, :]
              + Tt[4 * i + 1:4 * i + 2, :] * r[1:2, :]
              + Tt[4 * i + 2:4 * i + 3, :] * r[2:3, :]
              + Tt[4 * i + 3:4 * i + 4, :]          # homogeneous 1.0 column
              + off_ref[b, i])
        rows.append(vi)
    out3 = jnp.concatenate(rows, axis=0)                                      # (3, Vp)
    vout_ref[0] = out3
    jout_ref[0] = jnp.dot(out3, jret_ref[...], preferred_element_type=jnp.float32)


def skin(w_t, g_t, rest3, jre_t, offset):
    B = g_t.shape[0]
    J, Vp = w_t.shape
    return pl.pallas_call(
        _skin_kernel,
        out_shape=(jax.ShapeDtypeStruct((B, 3, Vp), DTYPE),
                   jax.ShapeDtypeStruct((B, 3, J), DTYPE)),
        grid=(B,),
        in_specs=[pl.BlockSpec((J, Vp), lambda b: (0, 0)),
                  pl.BlockSpec((1, 16, J), lambda b: (b, 0, 0)),
                  pl.BlockSpec((1, 3, Vp), lambda b: (b, 0, 0)),
                  pl.BlockSpec((Vp, J), lambda b: (0, 0)),
                  pl.BlockSpec(memory_space=pltpu.MemorySpace.SMEM)],
        out_specs=(pl.BlockSpec((1, 3, Vp), lambda b: (b, 0, 0)),
                   pl.BlockSpec((1, 3, J), lambda b: (b, 0, 0))),
        compiler_params=pltpu.CompilerParams(dimension_semantics=("parallel",)),
    )(w_t, g_t, rest3, jre_t, offset)


# ------------------------------ JAX glue -------------------------------------

def rodrigues(r):
    # r: (N, 1, 3) axis-angle -> (N, 3, 3) rotation matrices
    theta = jnp.sqrt(jnp.sum(r * r, axis=(1, 2), keepdims=True) + 1e-16)
    r_hat = r / theta
    cos = jnp.cos(theta)
    sin = jnp.sin(theta)
    z = jnp.zeros((r.shape[0],), dtype=r.dtype)
    m = jnp.stack([z, -r_hat[:, 0, 2], r_hat[:, 0, 1],
                   r_hat[:, 0, 2], z, -r_hat[:, 0, 0],
                   -r_hat[:, 0, 1], r_hat[:, 0, 0], z], axis=1).reshape(-1, 3, 3)
    i3 = jnp.eye(3, dtype=r.dtype)[None]
    outer = jnp.matmul(jnp.transpose(r_hat, (0, 2, 1)), r_hat)
    return cos * i3 + (1.0 - cos) * outer + sin * m


def with_zeros(x):
    # (B, 3, 4) -> (B, 4, 4) (append [0,0,0,1] row)
    B = x.shape[0]
    row = jnp.broadcast_to(jnp.array([[[0., 0., 0., 1.]]], dtype=x.dtype), (B, 1, 4))
    return jnp.concatenate([x, row], axis=1)


def pack(x):
    # (B, J, 4, 1) -> (B, J, 4, 4) (zeros in first 3 columns)
    z = jnp.zeros(x.shape[:3] + (3,), dtype=x.dtype)
    return jnp.concatenate([z, x], axis=3)


def kinematic_chain(r_big, joint, parents):
    # Level-ordered batched composition of the joint tree: O(depth) XLA ops
    # instead of J-1 sequential tiny matmuls.
    B, J = joint.shape[:2]
    parents_arr = np.asarray(parents)

    parent_joint = jnp.concatenate(
        [jnp.zeros((B, 1, 3), DTYPE), joint[:, np.asarray(parents[1:])]], axis=1)
    trans = (joint - parent_joint)[..., None]                       # (B, J, 3, 1)
    top = jnp.concatenate([r_big, trans], axis=3)                   # (B, J, 3, 4)
    bottom = jnp.broadcast_to(
        jnp.array([0., 0., 0., 1.], DTYPE).reshape(1, 1, 1, 4), (B, J, 1, 4))
    a_local = jnp.concatenate([top, bottom], axis=2)                # (B, J, 4, 4)

    depth = [0] * J
    for i in range(1, J):
        depth[i] = depth[parents[i]] + 1

    world = a_local                                                 # root already global
    for d in range(1, max(depth) + 1):
        idx = np.array([i for i in range(J) if depth[i] == d])
        pidx = parents_arr[idx]
        w_new = jnp.matmul(world[:, pidx], a_local[:, idx])         # (B, L, 4, 4)
        world = world.at[:, idx].set(w_new)
    return world                                                    # (B, J, 4, 4)


def prepare_params(params):
    """One-time preprocessing: coordinate-major, V-padded bases + folded joint regressor."""
    JRe = params["J_regressor"]     # (J, V)
    W = params["weights"]           # (V, J)
    pd = params["posedirs"]         # (V, 3, P)
    vt = params["v_template"]       # (V, 3)
    sd = params["shapedirs"]        # (V, 3, NB)

    J, V = JRe.shape
    NB = sd.shape[2]
    P = pd.shape[2]
    Vp = ((V + 127) // 128) * 128
    padv = Vp - V

    sd_flat = jnp.pad(jnp.transpose(sd, (2, 1, 0)),
                      ((0, 0), (0, 0), (0, padv))).reshape(NB, 3 * Vp)
    pd_flat = jnp.pad(jnp.transpose(pd, (2, 1, 0)),
                      ((0, 0), (0, 0), (0, padv))).reshape(P, 3 * Vp)
    tmpl_flat = jnp.pad(vt.T, ((0, 0), (0, padv))).reshape(1, 3 * Vp)
    w_t = jnp.pad(W.T, ((0, 0), (0, padv)))                         # (J, Vp)
    jre_t = jnp.pad(JRe.T, ((0, padv), (0, 0)))                     # (Vp, J)

    # Folded rest-pose joint regressor: joint = beta @ Jsd + Jt
    Jsd = jnp.einsum('jv,vcn->njc', JRe, sd)                        # (NB, J, 3)
    Jt = JRe @ vt                                                   # (J, 3)

    return dict(sd_flat=sd_flat, pd_flat=pd_flat, tmpl_flat=tmpl_flat,
                w_t=w_t, jre_t=jre_t, Jsd=Jsd, Jt=Jt,
                parents=params["parents"], J=J, V=V, Vp=Vp)


def smpl_forward(prep, beta, pose, offset):
    B = beta.shape[0]
    J, V, Vp = prep["J"], prep["V"], prep["Vp"]

    # pose -> per-joint rotation matrices (tiny elementwise glue)
    r_big = rodrigues(pose.reshape(-1, 1, 3)).reshape(B, J, 3, 3)
    lrotmin = (r_big[:, 1:] - jnp.eye(3, dtype=DTYPE)[None, None]).reshape(B, (J - 1) * 9)

    # rest-pose joints directly from beta (no V-sized intermediate, no extra kernel)
    joint = jnp.einsum('bn,njc->bjc', beta, prep["Jsd"]) + prep["Jt"][None]   # (B, J, 3)

    # Pallas: shape + pose blendshapes -> lane-dense (B, 3, Vp) rest geometry
    v_posed_flat = blend_shapes(beta, prep["sd_flat"], prep["tmpl_flat"],
                                lrotmin, prep["pd_flat"])
    rest3 = v_posed_flat.reshape(B, 3, Vp)

    # kinematic chain (level-ordered batched 4x4 matmuls)
    world = kinematic_chain(r_big, joint, prep["parents"])                    # (B, J, 4, 4)
    j_homo = jnp.concatenate([joint, jnp.zeros((B, J, 1), DTYPE)], axis=2)[..., None]
    g = world - pack(jnp.matmul(world, j_homo))                               # (B, J, 4, 4)
    g_t = jnp.transpose(g, (0, 2, 3, 1)).reshape(B, 16, J)                    # (B, 16, J)

    # Pallas: LBS skinning with fused posed-joint regression epilogue
    verts_t, joints_t = skin(prep["w_t"], g_t, rest3, prep["jre_t"], offset)

    result = jnp.transpose(verts_t[:, :, :V], (0, 2, 1))                      # (B, V, 3)
    joints = jnp.transpose(joints_t, (0, 2, 1))                               # (B, J, 3)
    return result, joints


# ------------------------ pure-JAX reference (mirror of torch code) ----------

def smpl_forward_ref(params, beta, pose, offset):
    JRe, W = params["J_regressor"], params["weights"]
    pd, vt, sd = params["posedirs"], params["v_template"], params["shapedirs"]
    parents = params["parents"]
    B = beta.shape[0]
    J, V = JRe.shape
    v_shaped = jnp.tensordot(beta, sd, axes=([1], [2])) + vt
    joint = jnp.matmul(JRe, v_shaped)
    r_big = rodrigues(pose.reshape(-1, 1, 3)).reshape(B, -1, 3, 3)
    lrotmin = (r_big[:, 1:] - jnp.eye(3, dtype=DTYPE)[None, None]).reshape(B, -1)
    v_posed = v_shaped + jnp.tensordot(lrotmin, pd, axes=([1], [2]))
    results = [with_zeros(jnp.concatenate(
        [r_big[:, 0], joint[:, 0, :].reshape(B, 3, 1)], axis=2))]
    for i in range(1, J):
        p = parents[i]
        results.append(jnp.matmul(results[p], with_zeros(jnp.concatenate(
            [r_big[:, i], (joint[:, i, :] - joint[:, p, :]).reshape(B, 3, 1)],
            axis=2))))
    stacked = jnp.stack(results, axis=1)
    results_m = stacked - pack(jnp.matmul(
        stacked,
        jnp.concatenate([joint, jnp.zeros((B, J, 1), DTYPE)],
                        axis=2).reshape(B, J, 4, 1)))
    T = jnp.transpose(jnp.tensordot(results_m, W, axes=([1], [1])), (0, 3, 1, 2))
    rest_h = jnp.concatenate([v_posed, jnp.ones((B, V, 1), DTYPE)], axis=2)
    v = jnp.matmul(T, rest_h.reshape(B, -1, 4, 1)).reshape(B, -1, 4)[:, :, :3]
    result = v + offset.reshape(B, 1, 3)
    joints = jnp.transpose(jnp.tensordot(result, JRe, axes=([1], [1])), (0, 2, 1))
    return result, joints


# ------------------------------- main ----------------------------------------

if __name__ == "__main__":
    B, V, J, NB = 2, 64, 55, 10
    P = (J - 1) * 9

    key = jax.random.PRNGKey(0)
    ks = jax.random.split(key, 8)
    params = {
        "J_regressor": jax.nn.softmax(jax.random.normal(ks[0], (J, V), DTYPE), axis=1),
        "weights":     jax.nn.softmax(jax.random.normal(ks[1], (V, J), DTYPE), axis=1),
        "posedirs":    0.01 * jax.random.normal(ks[2], (V, 3, P), DTYPE),
        "v_template":  jax.random.normal(ks[3], (V, 3), DTYPE),
        "shapedirs":   0.1 * jax.random.normal(ks[4], (V, 3, NB), DTYPE),
        # synthetic kintree: parent[i] = (i-1)//2 (always < i)
        "parents":     [0] + [(i - 1) // 2 for i in range(1, J)],
    }
    beta = jax.random.normal(ks[5], (B, NB), DTYPE)
    pose = 0.3 * jax.random.normal(ks[6], (B, J * 3), DTYPE)
    offset = jax.random.normal(ks[7], (B, 3), DTYPE)

    prep = prepare_params(params)
    fwd = jax.jit(lambda b, p, o: smpl_forward(prep, b, p, o))

    verts, joints = fwd(beta, pose, offset)
    jax.block_until_ready((verts, joints))

    verts_ref, joints_ref = smpl_forward_ref(params, beta, pose, offset)
    assert verts.shape == (B, V, 3) and joints.shape == (B, J, 3)
    np.testing.assert_allclose(np.asarray(verts), np.asarray(verts_ref),
                               rtol=5e-3, atol=5e-3)
    np.testing.assert_allclose(np.asarray(joints), np.asarray(joints_ref),
                               rtol=5e-3, atol=5e-3)
    print("KERNEL_OK")
</pallas_src>

<mosaic_0001>
module attributes {stable_mosaic.version = 11 : i64} {
  func.func @_skin_kernel(%arg0: i32, %arg1: memref<55x128xf32, #tpu.memory_space<vmem>>, %arg2: memref<1x16x55xf32, #tpu.memory_space<vmem>>, %arg3: memref<1x3x128xf32, #tpu.memory_space<vmem>>, %arg4: memref<128x55xf32, #tpu.memory_space<vmem>>, %arg5: memref<2x3xf32, #tpu.memory_space<smem>>, %arg6: memref<1x3x128xf32, #tpu.memory_space<vmem>>, %arg7: memref<1x3x55xf32, #tpu.memory_space<vmem>>) attributes {dimension_semantics = [#tpu.dimension_semantics<parallel>], iteration_bounds = array<i64: 2>, scalar_prefetch = 0 : i64, scratch_operands = 0 : i64, tpu.core_type = #tpu.core_type<tc>, window_params = [{pipeline_mode = #tpu.pipeline_mode<synchronous>, transform_indices = @transform_0, window_bounds = array<i64: 55, 128>}, {transform_indices = @transform_1, window_bounds = array<i64: 1, 16, 55>}, {transform_indices = @transform_2, window_bounds = array<i64: 1, 3, 128>}, {pipeline_mode = #tpu.pipeline_mode<synchronous>, transform_indices = @transform_3, window_bounds = array<i64: 128, 55>}, {transform_indices = @transform_4, window_bounds = array<i64: 2, 3>}, {transform_indices = @transform_5, window_bounds = array<i64: 1, 3, 128>}, {transform_indices = @transform_6, window_bounds = array<i64: 1, 3, 55>}]} {
    %c0 = arith.constant 0 : index
    %c0_0 = arith.constant 0 : index
    %c0_1 = arith.constant 0 : index
    %0 = vector.load %arg2[%c0, %c0_0, %c0_1] : memref<1x16x55xf32, #tpu.memory_space<vmem>>, vector<1x16x55xf32>
    %1 = vector.shape_cast %0 : vector<1x16x55xf32> to vector<16x55xf32>
    %c0_2 = arith.constant 0 : index
    %c0_3 = arith.constant 0 : index
    %2 = vector.load %arg1[%c0_2, %c0_3] : memref<55x128xf32, #tpu.memory_space<vmem>>, vector<55x128xf32>
    %cst = arith.constant dense<0.000000e+00> : vector<16x128xf32>
    %3 = tpu.matmul %1, %2, %cst {dimension_numbers = #tpu.dot_dimension_numbers<[1], [0], [0], [1], [0, 0, 1, 1], [], []>} : vector<16x55xf32>, vector<55x128xf32>, vector<16x128xf32> -> vector<16x128xf32>
    %c0_4 = arith.constant 0 : index
    %c0_5 = arith.constant 0 : index
    %c0_6 = arith.constant 0 : index
    %4 = vector.load %arg3[%c0_4, %c0_5, %c0_6] : memref<1x3x128xf32, #tpu.memory_space<vmem>>, vector<1x3x128xf32>
    %5 = vector.shape_cast %4 : vector<1x3x128xf32> to vector<3x128xf32>
    %6 = vector.extract_strided_slice %3 {offsets = [0, 0], sizes = [1, 128], strides = [1, 1]} : vector<16x128xf32> to vector<1x128xf32>
    %7 = vector.extract_strided_slice %5 {offsets = [0, 0], sizes = [1, 128], strides = [1, 1]} : vector<3x128xf32> to vector<1x128xf32>
    %8 = arith.mulf %6, %7 : vector<1x128xf32>
    %9 = vector.extract_strided_slice %3 {offsets = [1, 0], sizes = [1, 128], strides = [1, 1]} : vector<16x128xf32> to vector<1x128xf32>
    %10 = vector.extract_strided_slice %5 {offsets = [1, 0], sizes = [1, 128], strides = [1, 1]} : vector<3x128xf32> to vector<1x128xf32>
    %11 = arith.mulf %9, %10 : vector<1x128xf32>
    %12 = arith.addf %8, %11 : vector<1x128xf32>
    %13 = vector.extract_strided_slice %3 {offsets = [2, 0], sizes = [1, 128], strides = [1, 1]} : vector<16x128xf32> to vector<1x128xf32>
    %14 = vector.extract_strided_slice %5 {offsets = [2, 0], sizes = [1, 128], strides = [1, 1]} : vector<3x128xf32> to vector<1x128xf32>
    %15 = arith.mulf %13, %14 : vector<1x128xf32>
    %16 = arith.addf %12, %15 : vector<1x128xf32>
    %17 = vector.extract_strided_slice %3 {offsets = [3, 0], sizes = [1, 128], strides = [1, 1]} : vector<16x128xf32> to vector<1x128xf32>
    %18 = arith.addf %16, %17 : vector<1x128xf32>
    %19 = arith.index_cast %arg0 : i32 to index
    %c0_7 = arith.constant 0 : index
    %20 = memref.load %arg5[%19, %c0_7] : memref<2x3xf32, #tpu.memory_space<smem>>
    %21 = vector.broadcast %20 : f32 to vector<1x128xf32>
    %22 = arith.addf %18, %21 : vector<1x128xf32>
    %23 = vector.extract_strided_slice %3 {offsets = [4, 0], sizes = [1, 128], strides = [1, 1]} : vector<16x128xf32> to vector<1x128xf32>
    %24 = vector.extract_strided_slice %5 {offsets = [0, 0], sizes = [1, 128], strides = [1, 1]} : vector<3x128xf32> to vector<1x128xf32>
    %25 = arith.mulf %23, %24 : vector<1x128xf32>
    %26 = vector.extract_strided_slice %3 {offsets = [5, 0], sizes = [1, 128], strides = [1, 1]} : vector<16x128xf32> to vector<1x128xf32>
    %27 = vector.extract_strided_slice %5 {offsets = [1, 0], sizes = [1, 128], strides = [1, 1]} : vector<3x128xf32> to vector<1x128xf32>
    %28 = arith.mulf %26, %27 : vector<1x128xf32>
    %29 = arith.addf %25, %28 : vector<1x128xf32>
    %30 = vector.extract_strided_slice %3 {offsets = [6, 0], sizes = [1, 128], strides = [1, 1]} : vector<16x128xf32> to vector<1x128xf32>
    %31 = vector.extract_strided_slice %5 {offsets = [2, 0], sizes = [1, 128], strides = [1, 1]} : vector<3x128xf32> to vector<1x128xf32>
    %32 = arith.mulf %30, %31 : vector<1x128xf32>
    %33 = arith.addf %29, %32 : vector<1x128xf32>
    %34 = vector.extract_strided_slice %3 {offsets = [7, 0], sizes = [1, 128], strides = [1, 1]} : vector<16x128xf32> to vector<1x128xf32>
    %35 = arith.addf %33, %34 : vector<1x128xf32>
    %36 = arith.index_cast %arg0 : i32 to index
    %c1 = arith.constant 1 : index
    %37 = memref.load %arg5[%36, %c1] : memref<2x3xf32, #tpu.memory_space<smem>>
    %38 = vector.broadcast %37 : f32 to vector<1x128xf32>
    %39 = arith.addf %35, %38 : vector<1x128xf32>
    %40 = vector.extract_strided_slice %3 {offsets = [8, 0], sizes = [1, 128], strides = [1, 1]} : vector<16x128xf32> to vector<1x128xf32>
    %41 = vector.extract_strided_slice %5 {offsets = [0, 0], sizes = [1, 128], strides = [1, 1]} : vector<3x128xf32> to vector<1x128xf32>
    %42 = arith.mulf %40, %41 : vector<1x128xf32>
    %43 = vector.extract_strided_slice %3 {offsets = [9, 0], sizes = [1, 128], strides = [1, 1]} : vector<16x128xf32> to vector<1x128xf32>
    %44 = vector.extract_strided_slice %5 {offsets = [1, 0], sizes = [1, 128], strides = [1, 1]} : vector<3x128xf32> to vector<1x128xf32>
    %45 = arith.mulf %43, %44 : vector<1x128xf32>
    %46 = arith.addf %42, %45 : vector<1x128xf32>
    %47 = vector.extract_strided_slice %3 {offsets = [10, 0], sizes = [1, 128], strides = [1, 1]} : vector<16x128xf32> to vector<1x128xf32>
    %48 = vector.extract_strided_slice %5 {offsets = [2, 0], sizes = [1, 128], strides = [1, 1]} : vector<3x128xf32> to vector<1x128xf32>
    %49 = arith.mulf %47, %48 : vector<1x128xf32>
    %50 = arith.addf %46, %49 : vector<1x128xf32>
    %51 = vector.extract_strided_slice %3 {offsets = [11, 0], sizes = [1, 128], strides = [1, 1]} : vector<16x128xf32> to vector<1x128xf32>
    %52 = arith.addf %50, %51 : vector<1x128xf32>
    %53 = arith.index_cast %arg0 : i32 to index
    %c2 = arith.constant 2 : index
    %54 = memref.load %arg5[%53, %c2] : memref<2x3xf32, #tpu.memory_space<smem>>
    %55 = vector.broadcast %54 : f32 to vector<1x128xf32>
    %56 = arith.addf %52, %55 : vector<1x128xf32>
    %57 = tpu.concatenate %22, %39, %56 in 0 : vector<1x128xf32>, vector<1x128xf32>, vector<1x128xf32> -> vector<3x128xf32>
    %c0_8 = arith.constant 0 : index
    %c0_9 = arith.constant 0 : index
    %c0_10 = arith.constant 0 : index
    %58 = vector.load %arg6[%c0_8, %c0_9, %c0_10] : memref<1x3x128xf32, #tpu.memory_space<vmem>>, vector<1x3x128xf32>
    %59 = vector.shape_cast %58 : vector<1x3x128xf32> to vector<3x128xf32>
    %60 = vector.shape_cast %57 : vector<3x128xf32> to vector<1x3x128xf32>
    tpu.vector_store %arg6[%c0_8, %c0_9, %c0_10], %60 {strides = array<i32>} : memref<1x3x128xf32, #tpu.memory_space<vmem>>, vector<1x3x128xf32>,
    %c0_11 = arith.constant 0 : index
    %c0_12 = arith.constant 0 : index
    %61 = vector.load %arg4[%c0_11, %c0_12] : memref<128x55xf32, #tpu.memory_space<vmem>>, vector<128x55xf32>
    %cst_13 = arith.constant dense<0.000000e+00> : vector<3x55xf32>
    %62 = tpu.matmul %57, %61, %cst_13 {dimension_numbers = #tpu.dot_dimension_numbers<[1], [0], [0], [1], [0, 0, 1, 1], [], []>} : vector<3x128xf32>, vector<128x55xf32>, vector<3x55xf32> -> vector<3x55xf32>
    %c0_14 = arith.constant 0 : index
    %c0_15 = arith.constant 0 : index
    %c0_16 = arith.constant 0 : index
    %63 = vector.load %arg7[%c0_14, %c0_15, %c0_16] : memref<1x3x55xf32, #tpu.memory_space<vmem>>, vector<1x3x55xf32>
    %64 = vector.shape_cast %63 : vector<1x3x55xf32> to vector<3x55xf32>
    %65 = vector.shape_cast %62 : vector<3x55xf32> to vector<1x3x55xf32>
    tpu.vector_store %arg7[%c0_14, %c0_15, %c0_16], %65 {strides = array<i32>} : memref<1x3x55xf32, #tpu.memory_space<vmem>>, vector<1x3x55xf32>,
    return
  }
  func.func @transform_0(%arg0: i32) -> (i32, i32) {
    %c0_i32 = arith.constant 0 : i32
    %c0_i32_0 = arith.constant 0 : i32
    %c0_i32_1 = arith.constant 0 : i32
    return %c0_i32, %c0_i32_0 : i32, i32
  }
  func.func @transform_1(%arg0: i32) -> (i32, i32, i32) {
    %c0_i32 = arith.constant 0 : i32
    %c0_i32_0 = arith.constant 0 : i32
    %c0_i32_1 = arith.constant 0 : i32
    return %arg0, %c0_i32, %c0_i32_0 : i32, i32, i32
  }
  func.func @transform_2(%arg0: i32) -> (i32, i32, i32) {
    %c0_i32 = arith.constant 0 : i32
    %c0_i32_0 = arith.constant 0 : i32
    %c0_i32_1 = arith.constant 0 : i32
    return %arg0, %c0_i32, %c0_i32_0 : i32, i32, i32
  }
  func.func @transform_3(%arg0: i32) -> (i32, i32) {
    %c0_i32 = arith.constant 0 : i32
    %c0_i32_0 = arith.constant 0 : i32
    %c0_i32_1 = arith.constant 0 : i32
    return %c0_i32, %c0_i32_0 : i32, i32
  }
  func.func @transform_4(%arg0: i32) -> (i32, i32) {
    %c0_i32 = arith.constant 0 : i32
    %c0_i32_0 = arith.constant 0 : i32
    %c0_i32_1 = arith.constant 0 : i32
    return %c0_i32, %c0_i32_0 : i32, i32
  }
  func.func @transform_5(%arg0: i32) -> (i32, i32, i32) {
    %c0_i32 = arith.constant 0 : i32
    %c0_i32_0 = arith.constant 0 : i32
    %c0_i32_1 = arith.constant 0 : i32
    return %arg0, %c0_i32, %c0_i32_0 : i32, i32, i32
  }
  func.func @transform_6(%arg0: i32) -> (i32, i32, i32) {
    %c0_i32 = arith.constant 0 : i32
    %c0_i32_0 = arith.constant 0 : i32
    %c0_i32_1 = arith.constant 0 : i32
    return %arg0, %c0_i32, %c0_i32_0 : i32, i32, i32
  }
}

module attributes {stable_mosaic.version = 11 : i64} {
  func.func @_blend_kernel(%arg0: i32, %arg1: memref<2x10xf32, #tpu.memory_space<vmem>>, %arg2: memref<10x384xf32, #tpu.memory_space<vmem>>, %arg3: memref<1x384xf32, #tpu.memory_space<vmem>>, %arg4: memref<2x486xf32, #tpu.memory_space<vmem>>, %arg5: memref<486x384xf32, #tpu.memory_space<vmem>>, %arg6: memref<2x384xf32, #tpu.memory_space<vmem>>) attributes {dimension_semantics = [#tpu.dimension_semantics<parallel>], iteration_bounds = array<i64: 1>, scalar_prefetch = 0 : i64, scratch_operands = 0 : i64, tpu.core_type = #tpu.core_type<tc>, window_params = [{pipeline_mode = #tpu.pipeline_mode<synchronous>, transform_indices = @transform_0, window_bounds = array<i64: 2, 10>}, {transform_indices = @transform_1, window_bounds = array<i64: 10, 384>}, {transform_indices = @transform_2, window_bounds = array<i64: 1, 384>}, {pipeline_mode = #tpu.pipeline_mode<synchronous>, transform_indices = @transform_3, window_bounds = array<i64: 2, 486>}, {transform_indices = @transform_4, window_bounds = array<i64: 486, 384>}, {transform_indices = @transform_5, window_bounds = array<i64: 2, 384>}]} {
    %c0 = arith.constant 0 : index
    %c0_0 = arith.constant 0 : index
    %0 = vector.load %arg1[%c0, %c0_0] : memref<2x10xf32, #tpu.memory_space<vmem>>, vector<2x10xf32>
    %c0_1 = arith.constant 0 : index
    %c0_2 = arith.constant 0 : index
    %1 = vector.load %arg2[%c0_1, %c0_2] : memref<10x384xf32, #tpu.memory_space<vmem>>, vector<10x384xf32>
    %cst = arith.constant dense<0.000000e+00> : vector<2x384xf32>
    %2 = tpu.matmul %0, %1, %cst {dimension_numbers = #tpu.dot_dimension_numbers<[1], [0], [0], [1], [0, 0, 1, 1], [], []>} : vector<2x10xf32>, vector<10x384xf32>, vector<2x384xf32> -> vector<2x384xf32>
    %c0_3 = arith.constant 0 : index
    %c0_4 = arith.constant 0 : index
    %3 = vector.load %arg3[%c0_3, %c0_4] : memref<1x384xf32, #tpu.memory_space<vmem>>, vector<1x384xf32>
    %4 = vector.broadcast %3 : vector<1x384xf32> to vector<2x384xf32>
    %5 = arith.addf %2, %4 : vector<2x384xf32>
    %c0_5 = arith.constant 0 : index
    %c0_6 = arith.constant 0 : index
    %6 = vector.load %arg4[%c0_5, %c0_6] : memref<2x486xf32, #tpu.memory_space<vmem>>, vector<2x486xf32>
    %c0_7 = arith.constant 0 : index
    %c0_8 = arith.constant 0 : index
    %7 = vector.load %arg5[%c0_7, %c0_8] : memref<486x384xf32, #tpu.memory_space<vmem>>, vector<486x384xf32>
    %cst_9 = arith.constant dense<0.000000e+00> : vector<2x384xf32>
    %8 = tpu.matmul %6, %7, %cst_9 {dimension_numbers = #tpu.dot_dimension_numbers<[1], [0], [0], [1], [0, 0, 1, 1], [], []>} : vector<2x486xf32>, vector<486x384xf32>, vector<2x384xf32> -> vector<2x384xf32>
    %9 = arith.addf %5, %8 : vector<2x384xf32>
    %c0_10 = arith.constant 0 : index
    %c0_11 = arith.constant 0 : index
    %10 = vector.load %arg6[%c0_10, %c0_11] : memref<2x384xf32, #tpu.memory_space<vmem>>, vector<2x384xf32>
    tpu.vector_store %arg6[%c0_10, %c0_11], %9 {strides = array<i32>} : memref<2x384xf32, #tpu.memory_space<vmem>>, vector<2x384xf32>,
    return
  }
  func.func @transform_0(%arg0: i32) -> (i32, i32) {
    %c0_i32 = arith.constant 0 : i32
    %c0_i32_0 = arith.constant 0 : i32
    %c0_i32_1 = arith.constant 0 : i32
    return %c0_i32, %c0_i32_0 : i32, i32
  }
  func.func @transform_1(%arg0: i32) -> (i32, i32) {
    %c0_i32 = arith.constant 0 : i32
    %c0_i32_0 = arith.constant 0 : i32
    return %c0_i32, %arg0 : i32, i32
  }
  func.func @transform_2(%arg0: i32) -> (i32, i32) {
    %c0_i32 = arith.constant 0 : i32
    %c0_i32_0 = arith.constant 0 : i32
    return %c0_i32, %arg0 : i32, i32
  }
  func.func @transform_3(%arg0: i32) -> (i32, i32) {
    %c0_i32 = arith.constant 0 : i32
    %c0_i32_0 = arith.constant 0 : i32
    %c0_i32_1 = arith.constant 0 : i32
    return %c0_i32, %c0_i32_0 : i32, i32
  }
  func.func @transform_4(%arg0: i32) -> (i32, i32) {
    %c0_i32 = arith.constant 0 : i32
    %c0_i32_0 = arith.constant 0 : i32
    return %c0_i32, %arg0 : i32, i32
  }
  func.func @transform_5(%arg0: i32) -> (i32, i32) {
    %c0_i32 = arith.constant 0 : i32
    %c0_i32_0 = arith.constant 0 : i32
    return %c0_i32, %arg0 : i32, i32
  }
}

</mosaic_0001>

<llo_original>
// kernel: _lambda_.3
$region0: #{_lambda_.3}
  #allocation0 [shape = 'u32[]', space=smem, size = 0x4, offset = 0x4, fixed_abs, tag = 'smem constant byte address 0x4 - core index']
  #allocation1 [shape = 'u32[144,128]{1,0:T(1,128)}', space=vmem, size = 0x12000, scoped, tag = 'internal scratch']
  %s0 = inlined_call_operand.vmem [shape: f32[55,128], index: 0, kind: input, shape index: {}]
  %s1 = inlined_call_operand.vmem [shape: f32[2,16,55], index: 1, kind: input, shape index: {}]
  %s2 = inlined_call_operand.vmem [shape: f32[2,3,128], index: 2, kind: input, shape index: {}]
  %s3 = inlined_call_operand.vmem [shape: f32[128,55], index: 3, kind: input, shape index: {}]
  %s4 = inlined_call_operand.vmem [shape: f32[2,3], index: 4, kind: input, shape index: {}]
  %s5 = inlined_call_operand.vmem [shape: f32[2,3,128], index: 5, kind: output, shape index: {0}]
  %s6 = inlined_call_operand.vmem [shape: f32[2,3,55], index: 6, kind: output, shape index: {1}]
  %7 = xla_tuple %s5, %s6
  %s8 = sld [smem:[#allocation0]]
  $region65: #{_lambda_.3} parent=0
    _
  %s10 = ssub.s32 1, %s8
  %s11 = scalar_select 0, %s10, %s8
  $region1: #{_lambda_.3} parent=0
    #allocation2 [shape = 'u8[1024]{0}', space=smem, size = 0x400, scoped, tag = 'input window, operand 4, single buffered']
    #allocation3 [shape = 's32[2]{0}', space=sflag, size = 0x8, scoped, tag = 'scoped memory for _lambda_.3']
    %12 = vsyncpa [#allocation3], 0
    loop: start=0, step=1, limit=4
    $region2: #{_lambda_.3} parent=1 // loop_pre_header
      _
    $region3: #{_lambda_.3} parent=1 // loop_header
      %s14 = sphi 0, %s18
      %p15 = scmp.ge.s32.totalorder %s14, 4
      %s22 = sphi 0, %s22
      %s24 = sphi 0, %s22
      %s25 = sphi 0, %s24
      %s39 = sphi 0, %s25
      %s45 = sphi 0, %s47
      %s48 = sphi 0, %s45
      %s49 = sphi 0, %s48
      %s65 = sphi 0, %s49
      %s71 = sphi 0, %s73
      %s74 = sphi 0, %s71
      %s75 = sphi 0, %s74
      %s91 = sphi 0, %s75
      %s95 = sphi 0, %s95
      %s97 = sphi 0, %s95
      %s98 = sphi 0, %s97
      %s112 = sphi 0, %s98
      %s116 = sphi 0, %s116
      %s118 = sphi 0, %s116
      %s119 = sphi 0, %s118
      %s133 = sphi 0, %s119
      %s139 = sphi 0, %s141
      %s142 = sphi 0, %s139
      %s143 = sphi 0, %s142
      %s159 = sphi 0, %s143
      %s165 = sphi 0, %s167
      %s168 = sphi 0, %s165
      %s169 = sphi 0, %s168
      %s185 = sphi 0, %s169
    $region4: #{_lambda_.3} parent=1 // loop_header_branch
      %17 = sbr.rel (%p15) target = $region8
    $region5: #{_lambda_.3} parent=1 // loop_body
      %s19 = ssub.s32 %s14, 1
      %s20 = ssub.s32 %s14, 2
      %s21 = sadd.s32 %s14, 1
      %s23 = sadd.s32 %s22, 1
      %p26 = scmp.eq.s32.totalorder %s14, 1
      %p27 = scmp.ne.s32.totalorder %s22, %s24
      %p28 = scmp.eq.s32.totalorder %s14, 0
      %p29 = por %p27, %p28
      %p30 = scmp.ne.s32.totalorder %s22, %s24
      %p31 = scmp.eq.s32.totalorder %s19, 1
      %p32 = por %p30, %p31
      %p33 = scmp.ne.s32.totalorder %s24, %s25
      %p34 = scmp.eq.s32.totalorder %s19, 0
      %p35 = por %p33, %p34
      %p36 = scmp.ne.s32.totalorder %s24, %s25
      %p37 = scmp.eq.s32.totalorder %s20, 1
      %p38 = por %p36, %p37
      %p40 = scmp.ne.s32.totalorder %s25, %s39
      %p41 = scmp.eq.s32.totalorder %s20, 0
      %p42 = por %p40, %p41
      %s43 = ssub.s32 %s14, %s21
      %p44 = scmp.eq.s32.totalorder %s43, 0
      %s46 = sadd.s32 %s45, 1
      %s47 = scalar_select %p44, %s45, %s46
      %p50 = pneg %p44
      %p51 = scmp.eq.s32.totalorder %s14, 1
      %p52 = por %p50, %p51
      %p53 = scmp.ne.s32.totalorder %s45, %s48
      %p54 = scmp.eq.s32.totalorder %s14, 0
      %p55 = por %p53, %p54
      %p56 = scmp.ne.s32.totalorder %s45, %s48
      %p57 = scmp.eq.s32.totalorder %s19, 1
      %p58 = por %p56, %p57
      %p59 = scmp.ne.s32.totalorder %s48, %s49
      %p60 = scmp.eq.s32.totalorder %s19, 0
      %p61 = por %p59, %p60
      %p62 = scmp.ne.s32.totalorder %s48, %s49
      %p63 = scmp.eq.s32.totalorder %s20, 1
      %p64 = por %p62, %p63
      %p66 = scmp.ne.s32.totalorder %s49, %s65
      %p67 = scmp.eq.s32.totalorder %s20, 0
      %p68 = por %p66, %p67
      %s69 = ssub.s32 %s14, %s21
      %p70 = scmp.eq.s32.totalorder %s69, 0
      %s72 = sadd.s32 %s71, 1
      %s73 = scalar_select %p70, %s71, %s72
      %p76 = pneg %p70
      %p77 = scmp.eq.s32.totalorder %s14, 1
      %p78 = por %p76, %p77
      %p79 = scmp.ne.s32.totalorder %s71, %s74
      %p80 = scmp.eq.s32.totalorder %s14, 0
      %p81 = por %p79, %p80
      %p82 = scmp.ne.s32.totalorder %s71, %s74
      %p83 = scmp.eq.s32.totalorder %s19, 1
      %p84 = por %p82, %p83
      %p85 = scmp.ne.s32.totalorder %s74, %s75
      %p86 = scmp.eq.s32.totalorder %s19, 0
      %p87 = por %p85, %p86
      %p88 = scmp.ne.s32.totalorder %s74, %s75
      %p89 = scmp.eq.s32.totalorder %s20, 1
      %p90 = por %p88, %p89
      %p92 = scmp.ne.s32.totalorder %s75, %s91
      %p93 = scmp.eq.s32.totalorder %s20, 0
      %p94 = por %p92, %p93
      %s96 = sadd.s32 %s95, 1
      %p99 = scmp.eq.s32.totalorder %s14, 1
      %p100 = scmp.ne.s32.totalorder %s95, %s97
      %p101 = scmp.eq.s32.totalorder %s14, 0
      %p102 = por %p100, %p101
      %p103 = scmp.ne.s32.totalorder %s95, %s97
      %p104 = scmp.eq.s32.totalorder %s19, 1
      %p105 = por %p103, %p104
      %p106 = scmp.ne.s32.totalorder %s97, %s98
      %p107 = scmp.eq.s32.totalorder %s19, 0
      %p108 = por %p106, %p107
      %p109 = scmp.ne.s32.totalorder %s97, %s98
      %p110 = scmp.eq.s32.totalorder %s20, 1
      %p111 = por %p109, %p110
      %p113 = scmp.ne.s32.totalorder %s98, %s112
      %p114 = scmp.eq.s32.totalorder %s20, 0
      %p115 = por %p113, %p114
      %s117 = sadd.s32 %s116, 1
      %p120 = scmp.eq.s32.totalorder %s14, 1
      %p121 = scmp.ne.s32.totalorder %s116, %s118
      %p122 = scmp.eq.s32.totalorder %s14, 0
      %p123 = por %p121, %p122
      %p124 = scmp.ne.s32.totalorder %s116, %s118
      %p125 = scmp.eq.s32.totalorder %s19, 1
      %p126 = por %p124, %p125
      %p127 = scmp.ne.s32.totalorder %s118, %s119
      %p128 = scmp.eq.s32.totalorder %s19, 0
      %p129 = por %p127, %p128
      %p130 = scmp.ne.s32.totalorder %s118, %s119
      %p131 = scmp.eq.s32.totalorder %s20, 1
      %p132 = por %p130, %p131
      %p134 = scmp.ne.s32.totalorder %s119, %s133
      %p135 = scmp.eq.s32.totalorder %s20, 0
      %p136 = por %p134, %p135
      %s137 = ssub.s32 %s14, %s21
      %p138 = scmp.eq.s32.totalorder %s137, 0
      %s140 = sadd.s32 %s139, 1
      %s141 = scalar_select %p138, %s139, %s140
      %p144 = pneg %p138
      %p145 = scmp.eq.s32.totalorder %s14, 1
      %p146 = por %p144, %p145
      %p147 = scmp.ne.s32.totalorder %s139, %s142
      %p148 = scmp.eq.s32.totalorder %s14, 0
      %p149 = por %p147, %p148
      %p150 = scmp.ne.s32.totalorder %s139, %s142
      %p151 = scmp.eq.s32.totalorder %s19, 1
      %p152 = por %p150, %p151
      %p153 = scmp.ne.s32.totalorder %s142, %s143
      %p154 = scmp.eq.s32.totalorder %s19, 0
      %p155 = por %p153, %p154
      %p156 = scmp.ne.s32.totalorder %s142, %s143
      %p157 = scmp.eq.s32.totalorder %s20, 1
      %p158 = por %p156, %p157
      %p160 = scmp.ne.s32.totalorder %s143, %s159
      %p161 = scmp.eq.s32.totalorder %s20, 0
      %p162 = por %p160, %p161
      %s163 = ssub.s32 %s14, %s21
      %p164 = scmp.eq.s32.totalorder %s163, 0
      %s166 = sadd.s32 %s165, 1
      %s167 = scalar_select %p164, %s165, %s166
      %p170 = pneg %p164
      %p171 = scmp.eq.s32.totalorder %s14, 1
      %p172 = por %p170, %p171
      %p173 = scmp.ne.s32.totalorder %s165, %s168
      %p174 = scmp.eq.s32.totalorder %s14, 0
      %p175 = por %p173, %p174
      %p176 = scmp.ne.s32.totalorder %s165, %s168
      %p177 = scmp.eq.s32.totalorder %s19, 1
      %p178 = por %p176, %p177
      %p179 = scmp.ne.s32.totalorder %s168, %s169
      %p180 = scmp.eq.s32.totalorder %s19, 0
      %p181 = por %p179, %p180
      %p182 = scmp.ne.s32.totalorder %s168, %s169
      %p183 = scmp.eq.s32.totalorder %s20, 1
      %p184 = por %p182, %p183
      %p186 = scmp.ne.s32.totalorder %s169, %s185
      %p187 = scmp.eq.s32.totalorder %s20, 0
      %p188 = por %p186, %p187
      %p189 = scmp.le.s32.totalorder 1, %s14
      %p190 = scmp.lt.s32.totalorder %s14, 3
      %p191 = pnand %p189, %p190
      %p192 = pneg %p191
      // Predicated region
      $region9: #{_lambda_.3} parent=5 // pred_check
        _
      $region10: #{_lambda_.3} parent=5 // pred_check_branch
        %194 = sbr.rel (%p191) target = $region12
      $region11: #{_lambda_.3} parent=5 // pred_region
        %s195 = ssub.s32 %s14, 1
        // Predicated region
        $region13: #{_lambda_.3} parent=11 // pred_check
          %p196 = pneg %p35
        $region14: #{_lambda_.3} parent=11 // pred_check_branch
          %198 = sbr.rel (%p196) target = $region16
        $region15: #{_lambda_.3} parent=11 // pred_region
          _
        $region16: #{_lambda_.3} parent=11 // pred_fallthru
          _
        // Predicated region
        $region17: #{_lambda_.3} parent=11 // pred_check
          %p199 = pneg %p108
        $region18: #{_lambda_.3} parent=11 // pred_check_branch
          %201 = sbr.rel (%p199) target = $region20
        $region19: #{_lambda_.3} parent=11 // pred_region
          _
        $region20: #{_lambda_.3} parent=11 // pred_fallthru
          _
        // Predicated region
        $region21: #{_lambda_.3} parent=11 // pred_check
          %p202 = pneg %p129
        $region22: #{_lambda_.3} parent=11 // pred_check_branch
          %204 = sbr.rel (%p202) target = $region24
        $region23: #{_lambda_.3} parent=11 // pred_region
          %s206 = ssub.s32 32, 32
          %207 = vsyncadd [#allocation3], %s206
          %s209 = sshll.u32 %s4, 4
          %s210 = int_to_ptr.vmem [resolvable:$true] %s209
          %212 = dma.vmem_to_smem %s210, 32, [#allocation2], [#allocation3]
        $region24: #{_lambda_.3} parent=11 // pred_fallthru
          _
      $region12: #{_lambda_.3} parent=5 // pred_fallthru
        _
      %p213 = scmp.lt.s32.totalorder %s14, 2
      // Predicated region
      $region25: #{_lambda_.3} parent=5 // pred_check
        %p214 = pneg %p213
      $region26: #{_lambda_.3} parent=5 // pred_check_branch
        %216 = sbr.rel (%p214) target = $region28
      $region27: #{_lambda_.3} parent=5 // pred_region
        // Predicated region
        $region29: #{_lambda_.3} parent=27 // pred_check
          %p217 = pneg %p55
        $region30: #{_lambda_.3} parent=27 // pred_check_branch
          %219 = sbr.rel (%p217) target = $region32
        $region31: #{_lambda_.3} parent=27 // pred_region
          %p220 = scmp.lt.s32.totalorder %s14, 1
          %s221 = scalar_select %p220, %s14, 1
          %s222 = smul.addr %s221, 2
          %s223 = smul.addr %s222, 8
          %s224 = scalar_lea.vmem %s1, %s223
        $region32: #{_lambda_.3} parent=27 // pred_fallthru
          _
        // Predicated region
        $region33: #{_lambda_.3} parent=27 // pred_check
          %p225 = pneg %p81
        $region34: #{_lambda_.3} parent=27 // pred_check_branch
          %227 = sbr.rel (%p225) target = $region36
        $region35: #{_lambda_.3} parent=27 // pred_region
          %p228 = scmp.lt.s32.totalorder %s14, 1
          %s229 = scalar_select %p228, %s14, 1
          %s230 = smul.addr %s229, 4
          %s231 = scalar_lea.vmem %s2, %s230
        $region36: #{_lambda_.3} parent=27 // pred_fallthru
          _
      $region28: #{_lambda_.3} parent=5 // pred_fallthru
        _
      %p232 = scmp.le.s32.totalorder 1, %s14
      %p233 = scmp.lt.s32.totalorder %s14, 3
      %p234 = pnand %p232, %p233
      %p235 = pneg %p234
      // Predicated region
      $region37: #{_lambda_.3} parent=5 // pred_check
        _
      $region38: #{_lambda_.3} parent=5 // pred_check_branch
        %237 = sbr.rel (%p234) target = $region40
      $region39: #{_lambda_.3} parent=5 // pred_region
        %s238 = ssub.s32 %s14, 1
        // Predicated region
        $region41: #{_lambda_.3} parent=39 // pred_check
          %p239 = pneg %p129
        $region42: #{_lambda_.3} parent=39 // pred_check_branch
          %241 = sbr.rel (%p239) target = $region44
        $region43: #{_lambda_.3} parent=39 // pred_region
          %242 = dma.done [#allocation3], 32
        $region44: #{_lambda_.3} parent=39 // pred_fallthru
          _
        %243 = sfence
        %p244 = pneg %p35
        %p245 = pneg %p32
        %p246 = scmp.lt.s32.totalorder %s19, 1
        %s247 = scalar_select %p246, %s19, 1
        %s248 = smul.addr %s247, 2
        %s249 = smul.addr %s248, 8
        %s250 = scalar_lea.vmem %s1, %s249
        %p251 = pneg %p61
        %p252 = pneg %p58
        %p253 = scmp.lt.s32.totalorder %s19, 1
        %s254 = scalar_select %p253, %s19, 1
        %s255 = smul.addr %s254, 4
        %s256 = scalar_lea.vmem %s2, %s255
        %p257 = pneg %p87
        %p258 = pneg %p84
        %p259 = pneg %p108
        %p260 = pneg %p105
        %p261 = pneg %p129
        %p262 = pneg %p126
        %p263 = pneg %p155
        %p264 = pneg %p152
        %p265 = scmp.lt.s32.totalorder %s19, 1
        %s266 = scalar_select %p265, %s19, 1
        %s267 = smul.addr %s266, 4
        %s268 = scalar_lea.vmem %s5, %s267
        %p269 = pneg %p181
        %p270 = pneg %p178
        %p271 = scmp.lt.s32.totalorder %s19, 1
        %s272 = scalar_select %p271, %s19, 1
        %s273 = smul.addr %s272, 4
        %s274 = scalar_lea.vmem %s6, %s273
        %p275 = scmp.lt.s32.totalorder %s19, 1
        %s276 = scalar_select %p275, %s19, 1
        %s277 = smul.addr %s276, 2
        %s278 = smul.addr %s277, 8
        %s279 = scalar_lea.vmem %s1, %s278
        %p280 = scmp.lt.s32.totalorder %s19, 1
        %s281 = scalar_select %p280, %s19, 1
        %s282 = smul.addr %s281, 4
        %s283 = scalar_lea.vmem %s2, %s282
        %p284 = scmp.lt.s32.totalorder %s19, 1
        %s285 = scalar_select %p284, %s19, 1
        %s286 = smul.addr %s285, 4
        %s287 = scalar_lea.vmem %s5, %s286
        %p288 = scmp.lt.s32.totalorder %s19, 1
        %s289 = scalar_select %p288, %s19, 1
        %s290 = smul.addr %s289, 4
        %s291 = scalar_lea.vmem %s6, %s290
        %v292 = vld [vmem:[%s279] sm:$0xff]
        %v293 = vld [vmem:[%s279 + $0x8] sm:$0xff]
        %v294 = vld [vmem:[%s0] sm:$0xff]
        %v295 = vld [vmem:[%s0 + $0x8] sm:$0xff]
        %v296 = vld [vmem:[%s0 + $0x10] sm:$0xff]
        %v297 = vld [vmem:[%s0 + $0x18] sm:$0xff]
        %v298 = vld [vmem:[%s0 + $0x20] sm:$0xff]
        %v299 = vld [vmem:[%s0 + $0x28] sm:$0xff]
        %v300 = vld [vmem:[%s0 + $0x30] sm:$0x7f]
        %vm301 = vcmask 449536
        %v303 = vsel %vm301, %v292, 0
        %v306 = vsel %vm301, %v293, 0
        %vm308 = vcmask 1046528
        %v310 = vsel %vm308, %v300, 0
        %312 = vmatprep.subr.mxu0 0.0
        %313 = vmatpush1.msra.mxu0 0.0
        %314 = vmatprep.subr.mxu0 0.0
        %315 = vmatpush1.msra.mxu0 0.0
        %316 = vmatprep.subr.mxu0 0.0
        %317 = vmatpush1.msra.mxu0 0.0
        %318 = vmatprep.subr.mxu0 0.0
        %319 = vmatpush1.msra.mxu0 0.0
        %320 = vmatprep.subr.mxu0 0.0
        %321 = vmatpush1.msra.mxu0 0.0
        %322 = vmatprep.subr.mxu0 0.0
        %323 = vmatpush1.msra.mxu0 0.0
        %324 = vmatprep.subr.mxu0 0.0
        %325 = vmatpush1.msra.mxu0 0.0
        %326 = vmatprep.subr.mxu0 0.0
        %327 = vmatpush1.msra.mxu0 0.0
        %328 = vmatprep.subr.mxu0 0.0
        %329 = vmatpush1.msra.mxu0 0.0
        %330 = vmatprep.subr.mxu0 0.0
        %331 = vmatpush1.msra.mxu0 %v310
        %332 = vmatprep.subr.mxu0 0.0
        %333 = vmatpush1.msra.mxu0 %v299
        %334 = vmatprep.subr.mxu0 0.0
        %335 = vmatpush1.msra.mxu0 %v298
        %336 = vmatprep.subr.mxu0 0.0
        %337 = vmatpush1.msra.mxu0 %v297
        %338 = vmatprep.subr.mxu0 0.0
        %339 = vmatpush1.msra.mxu0 %v296
        %340 = vmatprep.subr.mxu0 0.0
        %341 = vmatpush1.msra.mxu0 %v295
        %342 = vmatprep.subr.mxu0 0.0
        %343 = vmatpush1.msra.mxu0 %v294
        %344 = vmatprep.subr.mxu0 0.0
        %345 = vmatpush2.msra.mxu0 0.0
        %346 = vmatprep.subr.mxu0 0.0
        %347 = vmatpush2.msra.mxu0 0.0
        %348 = vmatprep.subr.mxu0 0.0
        %349 = vmatpush2.msra.mxu0 0.0
        %350 = vmatprep.subr.mxu0 0.0
        %351 = vmatpush2.msra.mxu0 0.0
        %352 = vmatprep.subr.mxu0 0.0
        %353 = vmatpush2.msra.mxu0 0.0
        %354 = vmatprep.subr.mxu0 0.0
        %355 = vmatpush2.msra.mxu0 0.0
        %356 = vmatprep.subr.mxu0 0.0
        %357 = vmatpush2.msra.mxu0 0.0
        %358 = vmatprep.subr.mxu0 0.0
        %359 = vmatpush2.msra.mxu0 0.0
        %360 = vmatprep.subr.mxu0 0.0
        %361 = vmatpush2.msra.mxu0 0.0
        %362 = vmatprep.subr.mxu0 0.0
        %363 = vmatpush2.msra.mxu0 0.0
        %364 = vmatprep.subr.mxu0 0.0
        %365 = vmatpush2.msra.mxu0 0.0
        %366 = vmatprep.subr.mxu0 0.0
        %367 = vmatpush2.msra.mxu0 0.0
        %368 = vmatprep.subr.mxu0 0.0
        %369 = vmatpush2.msra.mxu0 0.0
        %370 = vmatprep.subr.mxu0 0.0
        %371 = vmatpush2.msra.mxu0 0.0
        %372 = vmatprep.subr.mxu0 0.0
        %373 = vmatpush2.msra.mxu0 0.0
        %374 = vmatprep.subr.mxu0 0.0
        %375 = vmatpush2.msra.mxu0 0.0
        %376 = vmatprep.mubr.f32.mxu0 0.0
        %377 = vmatmul.mubr.f32.gmra.mxu0 %v303
        %v378 = vpop.f32.mrf.mxu0
        %v379 = vadd.f32 0.0, %v378
        %v380 = vpop.f32.mrf.mxu0
        %381 = vmatprep.mubr.f32.mxu0 0.0
        %382 = vmatmul.mubr.f32.gmra.mxu0 %v306
        %v383 = vpop.f32.mrf.mxu0
        %v384 = vadd.f32 0.0, %v383
        %v385 = vpop.f32.mrf.mxu0
        %386 = vdwg.mxu0
        %v387 = vld [vmem:[%s283] sm:$0x7]
        %v388 = vmul.f32 %v379, %v387
        %v390 = vrot.slane %v388, 1
        %v392 = vadd.f32 %v388, %v390
        %v393 = vrot.slane %v388, 2
        %v395 = vadd.f32 %v392, %v393
        %v397 = vrot.slane %v379, 3
        %v399 = vadd.f32 %v395, %v397
        %s400 = smul.u32 %s19, 128
        %s401 = sld [smem:[#allocation2 + %s400]]
        %v402 = vstv %s401
        %v403 = vadd.f32 %v399, %v402
        %v405 = vrot.slane %v387, 4
        %v407 = vmul.f32 %v379, %v405
        %v409 = vrot.slane %v407, 1
        %v411 = vadd.f32 %v407, %v409
        %v412 = vrot.slane %v407, 2
        %v414 = vadd.f32 %v411, %v412
        %v415 = vadd.f32 %v414, %v397
        %s416 = sadd.s32 %s400, 1
        %s417 = sld [smem:[#allocation2 + %s416]]
        %v418 = vstv %s417
        %v419 = vadd.f32 %v415, %v418
        %v420 = vmul.f32 %v384, %v387
        %v422 = vrot.slane %v420, 1
        %v424 = vadd.f32 %v420, %v422
        %v425 = vrot.slane %v420, 2
        %v427 = vadd.f32 %v424, %v425
        %v429 = vrot.slane %v384, 3
        %v431 = vadd.f32 %v427, %v429
        %s432 = sadd.s32 %s400, 2
        %s433 = sld [smem:[#allocation2 + %s432]]
        %v434 = vstv %s433
        %v435 = vadd.f32 %v431, %v434
        %v437 = vrot.slane %v419, 3
        %v440 = vrot.slane %v435, 6
        %vm442 = vcmask 1040384
        %v443 = vsel %vm442, %v403, %v437
        %vm444 = vcmask 1041408
        %v445 = vsel %vm444, %v443, %v440
        %446 = vst [vmem:[%s287] sm:$0x7] %v445
        %v447 = vld [vmem:[%s3] sm:$0xff]
        %v448 = vld [vmem:[%s3 + $0x8] sm:$0xff]
        %v449 = vld [vmem:[%s3 + $0x10] sm:$0xff]
        %v450 = vld [vmem:[%s3 + $0x18] sm:$0xff]
        %v451 = vld [vmem:[%s3 + $0x20] sm:$0xff]
        %v452 = vld [vmem:[%s3 + $0x28] sm:$0xff]
        %v453 = vld [vmem:[%s3 + $0x30] sm:$0xff]
        %v454 = vld [vmem:[%s3 + $0x38] sm:$0xff]
        %v455 = vld [vmem:[%s3 + $0x40] sm:$0xff]
        %v456 = vld [vmem:[%s3 + $0x48] sm:$0xff]
        %v457 = vld [vmem:[%s3 + $0x50] sm:$0xff]
        %v458 = vld [vmem:[%s3 + $0x58] sm:$0xff]
        %v459 = vld [vmem:[%s3 + $0x60] sm:$0xff]
        %v460 = vld [vmem:[%s3 + $0x68] sm:$0xff]
        %v461 = vld [vmem:[%s3 + $0x70] sm:$0xff]
        %v462 = vld [vmem:[%s3 + $0x78] sm:$0xff]
        %463 = vmatprep.subr.mxu0 0.0
        %464 = vmatpush1.msra.mxu0 %v462
        %465 = vmatprep.subr.mxu0 0.0
        %466 = vmatpush1.msra.mxu0 %v461
        %467 = vmatprep.subr.mxu0 0.0
        %468 = vmatpush1.msra.mxu0 %v460
        %469 = vmatprep.subr.mxu0 0.0
        %470 = vmatpush1.msra.mxu0 %v459
        %471 = vmatprep.subr.mxu0 0.0
        %472 = vmatpush1.msra.mxu0 %v458
        %473 = vmatprep.subr.mxu0 0.0
        %474 = vmatpush1.msra.mxu0 %v457
        %475 = vmatprep.subr.mxu0 0.0
        %476 = vmatpush1.msra.mxu0 %v456
        %477 = vmatprep.subr.mxu0 0.0
        %478 = vmatpush1.msra.mxu0 %v455
        %479 = vmatprep.subr.mxu0 0.0
        %480 = vmatpush1.msra.mxu0 %v454
        %481 = vmatprep.subr.mxu0 0.0
        %482 = vmatpush1.msra.mxu0 %v453
        %483 = vmatprep.subr.mxu0 0.0
        %484 = vmatpush1.msra.mxu0 %v452
        %485 = vmatprep.subr.mxu0 0.0
        %486 = vmatpush1.msra.mxu0 %v451
        %487 = vmatprep.subr.mxu0 0.0
        %488 = vmatpush1.msra.mxu0 %v450
        %489 = vmatprep.subr.mxu0 0.0
        %490 = vmatpush1.msra.mxu0 %v449
        %491 = vmatprep.subr.mxu0 0.0
        %492 = vmatpush1.msra.mxu0 %v448
        %493 = vmatprep.subr.mxu0 0.0
        %494 = vmatpush1.msra.mxu0 %v447
        %495 = vmatprep.subr.mxu0 0.0
        %496 = vmatpush2.msra.mxu0 0.0
        %497 = vmatprep.subr.mxu0 0.0
        %498 = vmatpush2.msra.mxu0 0.0
        %499 = vmatprep.subr.mxu0 0.0
        %500 = vmatpush2.msra.mxu0 0.0
        %501 = vmatprep.subr.mxu0 0.0
        %502 = vmatpush2.msra.mxu0 0.0
        %503 = vmatprep.subr.mxu0 0.0
        %504 = vmatpush2.msra.mxu0 0.0
        %505 = vmatprep.subr.mxu0 0.0
        %506 = vmatpush2.msra.mxu0 0.0
        %507 = vmatprep.subr.mxu0 0.0
        %508 = vmatpush2.msra.mxu0 0.0
        %509 = vmatprep.subr.mxu0 0.0
        %510 = vmatpush2.msra.mxu0 0.0
        %511 = vmatprep.subr.mxu0 0.0
        %512 = vmatpush2.msra.mxu0 0.0
        %513 = vmatprep.subr.mxu0 0.0
        %514 = vmatpush2.msra.mxu0 0.0
        %515 = vmatprep.subr.mxu0 0.0
        %516 = vmatpush2.msra.mxu0 0.0
        %517 = vmatprep.subr.mxu0 0.0
        %518 = vmatpush2.msra.mxu0 0.0
        %519 = vmatprep.subr.mxu0 0.0
        %520 = vmatpush2.msra.mxu0 0.0
        %521 = vmatprep.subr.mxu0 0.0
        %522 = vmatpush2.msra.mxu0 0.0
        %523 = vmatprep.subr.mxu0 0.0
        %524 = vmatpush2.msra.mxu0 0.0
        %525 = vmatprep.subr.mxu0 0.0
        %526 = vmatpush2.msra.mxu0 0.0
        %527 = vmatprep.mubr.f32.mxu0 0.0
        %528 = vmatmul.mubr.f32.gmra.mxu0 %v445
        %v529 = vpop.f32.mrf.mxu0
        %v530 = vadd.f32 0.0, %v529
        %v531 = vpop.f32.mrf.mxu0
        %532 = vdwg.mxu0
        %vm533 = vcmask 444416
        %534 = vst.msk [vmem:[%s291] sm:$0x7] %vm533, %v530
        %p535 = scmp.lt.s32.totalorder %s19, 1
        %s536 = scalar_select %p535, %s19, 1
        %s537 = smul.addr %s536, 4
        %s538 = scalar_lea.vmem %s5, %s537
        %p539 = scmp.lt.s32.totalorder %s19, 1
        %s540 = scalar_select %p539, %s19, 1
        %s541 = smul.addr %s540, 4
        %s542 = scalar_lea.vmem %s6, %s541
        // Predicated region
        $region45: #{_lambda_.3} parent=39 // pred_check
          %p543 = pneg %p152
        $region46: #{_lambda_.3} parent=39 // pred_check_branch
          %545 = sbr.rel (%p543) target = $region48
        $region47: #{_lambda_.3} parent=39 // pred_region
          _
        $region48: #{_lambda_.3} parent=39 // pred_fallthru
          _
        // Predicated region
        $region49: #{_lambda_.3} parent=39 // pred_check
          %p546 = pneg %p178
        $region50: #{_lambda_.3} parent=39 // pred_check_branch
          %548 = sbr.rel (%p546) target = $region52
        $region51: #{_lambda_.3} parent=39 // pred_region
          _
        $region52: #{_lambda_.3} parent=39 // pred_fallthru
          _
      $region40: #{_lambda_.3} parent=5 // pred_fallthru
        _
      %p549 = scmp.le.s32.totalorder 2, %s14
      // Predicated region
      $region53: #{_lambda_.3} parent=5 // pred_check
        %p550 = pneg %p549
      $region54: #{_lambda_.3} parent=5 // pred_check_branch
        %552 = sbr.rel (%p550) target = $region56
      $region55: #{_lambda_.3} parent=5 // pred_region
        %s553 = ssub.s32 %s14, 2
        // Predicated region
        $region57: #{_lambda_.3} parent=55 // pred_check
          %p554 = pneg %p158
        $region58: #{_lambda_.3} parent=55 // pred_check_branch
          %556 = sbr.rel (%p554) target = $region60
        $region59: #{_lambda_.3} parent=55 // pred_region
          %p557 = scmp.lt.s32.totalorder %s20, 1
          %s558 = scalar_select %p557, %s20, 1
          %s559 = smul.addr %s558, 4
          %s560 = scalar_lea.vmem %s5, %s559
        $region60: #{_lambda_.3} parent=55 // pred_fallthru
          _
        // Predicated region
        $region61: #{_lambda_.3} parent=55 // pred_check
          %p561 = pneg %p184
        $region62: #{_lambda_.3} parent=55 // pred_check_branch
          %563 = sbr.rel (%p561) target = $region64
        $region63: #{_lambda_.3} parent=55 // pred_region
          %p564 = scmp.lt.s32.totalorder %s20, 1
          %s565 = scalar_select %p564, %s20, 1
          %s566 = smul.addr %s565, 4
          %s567 = scalar_lea.vmem %s6, %s566
        $region64: #{_lambda_.3} parent=55 // pred_fallthru
          _
      $region56: #{_lambda_.3} parent=5 // pred_fallthru
        _
    $region6: #{_lambda_.3} parent=1 // loop_footer
      %s18 = sadd.s32 1, %s14
    $region7: #{_lambda_.3} parent=1 // loop_footer_branch
      %13 = sbr.rel target = $region3
    $region8: #{_lambda_.3} parent=1 // loop_exit
      _
    %568 = vsyncpa [#allocation3], 1
    %s569 = scalar_lea.sflag [#allocation3], 1
    %570 = vsyncpa %s569, 1

// kernel: _lambda_.2
$region0: #{_lambda_.2}
  #allocation0 [shape = 'u32[]', space=smem, size = 0x4, offset = 0x4, fixed_abs, tag = 'smem constant byte address 0x4 - core index']
  #allocation1 [shape = 'u32[144,128]{1,0:T(1,128)}', space=vmem, size = 0x12000, scoped, tag = 'internal scratch']
  %s0 = inlined_call_operand.vmem [shape: f32[2,10], index: 0, kind: input, shape index: {}]
  %s1 = inlined_call_operand.vmem [shape: f32[10,384], index: 1, kind: input, shape index: {}]
  %s2 = inlined_call_operand.vmem [shape: f32[1,384], index: 2, kind: input, shape index: {}]
  %s3 = inlined_call_operand.vmem [shape: f32[2,486], index: 3, kind: input, shape index: {}]
  %s4 = inlined_call_operand.vmem [shape: f32[486,384], index: 4, kind: input, shape index: {}]
  %s5 = inlined_call_operand.vmem [shape: f32[2,384], index: 5, kind: output, shape index: {}]
  %s6 = sld [smem:[#allocation0]]
  $region30: #{_lambda_.2} parent=0
    _
  %s8 = ssub.s32 1, %s6
  %s9 = scalar_select 0, %s8, %s6
  // Predicated region
  $region2: #{_lambda_.2} parent=0 // pred_check
    _
  $region3: #{_lambda_.2} parent=0 // pred_check_branch
    %11 = sbr.rel (0) target = $region5
  $region4: #{_lambda_.2} parent=0 // pred_region
    _
  $region5: #{_lambda_.2} parent=0 // pred_fallthru
    _
  // Predicated region
  $region6: #{_lambda_.2} parent=0 // pred_check
    _
  $region7: #{_lambda_.2} parent=0 // pred_check_branch
    %13 = sbr.rel (0) target = $region9
  $region8: #{_lambda_.2} parent=0 // pred_region
    _
  $region9: #{_lambda_.2} parent=0 // pred_fallthru
    _
  // Predicated region
  $region10: #{_lambda_.2} parent=0 // pred_check
    _
  $region11: #{_lambda_.2} parent=0 // pred_check_branch
    %15 = sbr.rel (0) target = $region13
  $region12: #{_lambda_.2} parent=0 // pred_region
    _
  $region13: #{_lambda_.2} parent=0 // pred_fallthru
    _
  // Predicated region
  $region14: #{_lambda_.2} parent=0 // pred_check
    _
  $region15: #{_lambda_.2} parent=0 // pred_check_branch
    %17 = sbr.rel (0) target = $region17
  $region16: #{_lambda_.2} parent=0 // pred_region
    _
  $region17: #{_lambda_.2} parent=0 // pred_fallthru
    _
  // Predicated region
  $region18: #{_lambda_.2} parent=0 // pred_check
    _
  $region19: #{_lambda_.2} parent=0 // pred_check_branch
    %19 = sbr.rel (0) target = $region21
  $region20: #{_lambda_.2} parent=0 // pred_region
    _
  $region21: #{_lambda_.2} parent=0 // pred_fallthru
    _
  %v20 = vld [vmem:[%s0] sm:$0x3]
  %v21 = vld [vmem:[%s1] sm:$0xff]
  %v22 = vld [vmem:[%s1 + $0x8] sm:$0xff]
  %v23 = vld [vmem:[%s1 + $0x10] sm:$0xff]
  %v24 = vld [vmem:[%s1 + $0x18] sm:$0x3]
  %v25 = vld [vmem:[%s1 + $0x20] sm:$0x3]
  %v26 = vld [vmem:[%s1 + $0x28] sm:$0x3]
  %v27 = vld [vmem:[%s2] sm:$0x7]
  %v29 = vlaneseq
  %v30 = vshrl.u32 %v29, 7
  %v31 = vsub.s32 0, %v30
  %v32 = vrot.slane %v27, %v31
  %v33 = vlaneseq
  %v34 = vshrl.u32 %v33, 7
  %v35 = vsub.s32 1, %v34
  %v36 = vrot.slane %v27, %v35
  %v37 = vlaneseq
  %v38 = vshrl.u32 %v37, 7
  %v39 = vsub.s32 2, %v38
  %v40 = vrot.slane %v27, %v39
  %vm44 = vcmask 80896
  %v46 = vsel %vm44, %v20, 0
  %vm48 = vcmask 1041408
  %v50 = vsel %vm48, %v24, 0
  %v53 = vsel %vm48, %v25, 0
  %v56 = vsel %vm48, %v26, 0
  %58 = vmatprep.subr.mxu0 0.0
  %59 = vmatpush1.msra.mxu0 0.0
  %60 = vmatprep.subr.mxu0 0.0
  %61 = vmatpush1.msra.mxu0 0.0
  %62 = vmatprep.subr.mxu0 0.0
  %63 = vmatpush1.msra.mxu0 0.0
  %64 = vmatprep.subr.mxu0 0.0
  %65 = vmatpush1.msra.mxu0 0.0
  %66 = vmatprep.subr.mxu0 0.0
  %67 = vmatpush1.msra.mxu0 0.0
  %68 = vmatprep.subr.mxu0 0.0
  %69 = vmatpush1.msra.mxu0 0.0
  %70 = vmatprep.subr.mxu0 0.0
  %71 = vmatpush1.msra.mxu0 0.0
  %72 = vmatprep.subr.mxu0 0.0
  %73 = vmatpush1.msra.mxu0 0.0
  %74 = vmatprep.subr.mxu0 0.0
  %75 = vmatpush1.msra.mxu0 0.0
  %76 = vmatprep.subr.mxu0 0.0
  %77 = vmatpush1.msra.mxu0 0.0
  %78 = vmatprep.subr.mxu0 0.0
  %79 = vmatpush1.msra.mxu0 0.0
  %80 = vmatprep.subr.mxu0 0.0
  %81 = vmatpush1.msra.mxu0 0.0
  %82 = vmatprep.subr.mxu0 0.0
  %83 = vmatpush1.msra.mxu0 0.0
  %84 = vmatprep.subr.mxu0 0.0
  %85 = vmatpush1.msra.mxu0 0.0
  %86 = vmatprep.subr.mxu0 %v53
  %87 = vmatpush1.msra.mxu0 %v50
  %88 = vmatprep.subr.mxu0 %v22
  %89 = vmatpush1.msra.mxu0 %v21
  %90 = vmatprep.subr.mxu0 0.0
  %91 = vmatpush2.msra.mxu0 0.0
  %92 = vmatprep.subr.mxu0 0.0
  %93 = vmatpush2.msra.mxu0 0.0
  %94 = vmatprep.subr.mxu0 0.0
  %95 = vmatpush2.msra.mxu0 0.0
  %96 = vmatprep.subr.mxu0 0.0
  %97 = vmatpush2.msra.mxu0 0.0
  %98 = vmatprep.subr.mxu0 0.0
  %99 = vmatpush2.msra.mxu0 0.0
  %100 = vmatprep.subr.mxu0 0.0
  %101 = vmatpush2.msra.mxu0 0.0
  %102 = vmatprep.subr.mxu0 0.0
  %103 = vmatpush2.msra.mxu0 0.0
  %104 = vmatprep.subr.mxu0 0.0
  %105 = vmatpush2.msra.mxu0 0.0
  %106 = vmatprep.subr.mxu0 0.0
  %107 = vmatpush2.msra.mxu0 0.0
  %108 = vmatprep.subr.mxu0 0.0
  %109 = vmatpush2.msra.mxu0 0.0
  %110 = vmatprep.subr.mxu0 0.0
  %111 = vmatpush2.msra.mxu0 0.0
  %112 = vmatprep.subr.mxu0 0.0
  %113 = vmatpush2.msra.mxu0 0.0
  %114 = vmatprep.subr.mxu0 0.0
  %115 = vmatpush2.msra.mxu0 0.0
  %116 = vmatprep.subr.mxu0 0.0
  %117 = vmatpush2.msra.mxu0 0.0
  %118 = vmatprep.subr.mxu0 0.0
  %119 = vmatpush2.msra.mxu0 0.0
  %120 = vmatprep.subr.mxu0 0.0
  %121 = vmatpush2.msra.mxu0 0.0
  %122 = vmatprep.mubr.f32.mxu0 0.0
  %123 = vmatmul.mubr.f32.gmra.mxu0 %v46
  %v124 = vpop.f32.mrf.mxu0
  %v125 = vadd.f32 %v32, %v124
  %v126 = vpop.f32.mrf.mxu0
  %v127 = vadd.f32 %v36, %v126
  %128 = vdwg.mxu0
  %129 = vmatprep.subr.mxu0 0.0
  %130 = vmatpush1.msra.mxu0 0.0
  %131 = vmatprep.subr.mxu0 0.0
  %132 = vmatpush1.msra.mxu0 0.0
  %133 = vmatprep.subr.mxu0 0.0
  %134 = vmatpush1.msra.mxu0 0.0
  %135 = vmatprep.subr.mxu0 0.0
  %136 = vmatpush1.msra.mxu0 0.0
  %137 = vmatprep.subr.mxu0 0.0
  %138 = vmatpush1.msra.mxu0 0.0
  %139 = vmatprep.subr.mxu0 0.0
  %140 = vmatpush1.msra.mxu0 0.0
  %141 = vmatprep.subr.mxu0 0.0
  %142 = vmatpush1.msra.mxu0 0.0
  %143 = vmatprep.subr.mxu0 0.0
  %144 = vmatpush1.msra.mxu0 0.0
  %145 = vmatprep.subr.mxu0 0.0
  %146 = vmatpush1.msra.mxu0 0.0
  %147 = vmatprep.subr.mxu0 0.0
  %148 = vmatpush1.msra.mxu0 0.0
  %149 = vmatprep.subr.mxu0 0.0
  %150 = vmatpush1.msra.mxu0 0.0
  %151 = vmatprep.subr.mxu0 0.0
  %152 = vmatpush1.msra.mxu0 0.0
  %153 = vmatprep.subr.mxu0 0.0
  %154 = vmatpush1.msra.mxu0 0.0
  %155 = vmatprep.subr.mxu0 0.0
  %156 = vmatpush1.msra.mxu0 0.0
  %157 = vmatprep.subr.mxu0 0.0
  %158 = vmatpush1.msra.mxu0 %v56
  %159 = vmatprep.subr.mxu0 0.0
  %160 = vmatpush1.msra.mxu0 %v23
  %161 = vmatprep.subr.mxu0 0.0
  %162 = vmatpush2.msra.mxu0 0.0
  %163 = vmatprep.subr.mxu0 0.0
  %164 = vmatpush2.msra.mxu0 0.0
  %165 = vmatprep.subr.mxu0 0.0
  %166 = vmatpush2.msra.mxu0 0.0
  %167 = vmatprep.subr.mxu0 0.0
  %168 = vmatpush2.msra.mxu0 0.0
  %169 = vmatprep.subr.mxu0 0.0
  %170 = vmatpush2.msra.mxu0 0.0
  %171 = vmatprep.subr.mxu0 0.0
  %172 = vmatpush2.msra.mxu0 0.0
  %173 = vmatprep.subr.mxu0 0.0
  %174 = vmatpush2.msra.mxu0 0.0
  %175 = vmatprep.subr.mxu0 0.0
  %176 = vmatpush2.msra.mxu0 0.0
  %177 = vmatprep.subr.mxu0 0.0
  %178 = vmatpush2.msra.mxu0 0.0
  %179 = vmatprep.subr.mxu0 0.0
  %180 = vmatpush2.msra.mxu0 0.0
  %181 = vmatprep.subr.mxu0 0.0
  %182 = vmatpush2.msra.mxu0 0.0
  %183 = vmatprep.subr.mxu0 0.0
  %184 = vmatpush2.msra.mxu0 0.0
  %185 = vmatprep.subr.mxu0 0.0
  %186 = vmatpush2.msra.mxu0 0.0
  %187 = vmatprep.subr.mxu0 0.0
  %188 = vmatpush2.msra.mxu0 0.0
  %189 = vmatprep.subr.mxu0 0.0
  %190 = vmatpush2.msra.mxu0 0.0
  %191 = vmatprep.subr.mxu0 0.0
  %192 = vmatpush2.msra.mxu0 0.0
  %193 = vmatprep.mubr.f32.mxu0 0.0
  %194 = vmatmul.mubr.f32.gmra.mxu0 %v46
  %v195 = vpop.f32.mrf.mxu0
  %v196 = vadd.f32 %v40, %v195
  %v197 = vpop.f32.mrf.mxu0
  %198 = vdwg.mxu0
  %v199 = vld [vmem:[%s3] sm:$0xff]
  %v200 = vld [vmem:[%s4] sm:$0xff]
  %v201 = vld [vmem:[%s4 + $0x8] sm:$0xff]
  %v202 = vld [vmem:[%s4 + $0x10] sm:$0xff]
  %v203 = vld [vmem:[%s4 + $0x18] sm:$0xff]
  %v204 = vld [vmem:[%s4 + $0x20] sm:$0xff]
  %v205 = vld [vmem:[%s4 + $0x28] sm:$0xff]
  %v206 = vld [vmem:[%s4 + $0x30] sm:$0xff]
  %v207 = vld [vmem:[%s4 + $0x38] sm:$0xff]
  %v208 = vld [vmem:[%s4 + $0x40] sm:$0xff]
  %v209 = vld [vmem:[%s4 + $0x48] sm:$0xff]
  %v210 = vld [vmem:[%s4 + $0x50] sm:$0xff]
  %v211 = vld [vmem:[%s4 + $0x58] sm:$0xff]
  %v212 = vld [vmem:[%s4 + $0x60] sm:$0xff]
  %v213 = vld [vmem:[%s4 + $0x68] sm:$0xff]
  %v214 = vld [vmem:[%s4 + $0x70] sm:$0xff]
  %v215 = vld [vmem:[%s4 + $0x78] sm:$0xff]
  %v216 = vld [vmem:[%s4 + $0x80] sm:$0xff]
  %v217 = vld [vmem:[%s4 + $0x88] sm:$0xff]
  %v218 = vld [vmem:[%s4 + $0x90] sm:$0xff]
  %v219 = vld [vmem:[%s4 + $0x98] sm:$0xff]
  %v220 = vld [vmem:[%s4 + $0xa0] sm:$0xff]
  %v221 = vld [vmem:[%s4 + $0xa8] sm:$0xff]
  %v222 = vld [vmem:[%s4 + $0xb0] sm:$0xff]
  %v223 = vld [vmem:[%s4 + $0xb8] sm:$0xff]
  %v224 = vld [vmem:[%s4 + $0xc0] sm:$0xff]
  %v225 = vld [vmem:[%s4 + $0xc8] sm:$0xff]
  %v226 = vld [vmem:[%s4 + $0xd0] sm:$0xff]
  %v227 = vld [vmem:[%s4 + $0xd8] sm:$0xff]
  %v228 = vld [vmem:[%s4 + $0xe0] sm:$0xff]
  %v229 = vld [vmem:[%s4 + $0xe8] sm:$0xff]
  %v230 = vld [vmem:[%s4 + $0xf0] sm:$0xff]
  %v231 = vld [vmem:[%s4 + $0xf8] sm:$0xff]
  %v232 = vld [vmem:[%s4 + $0x100] sm:$0xff]
  %v233 = vld [vmem:[%s4 + $0x108] sm:$0xff]
  %v234 = vld [vmem:[%s4 + $0x110] sm:$0xff]
  %v235 = vld [vmem:[%s4 + $0x118] sm:$0xff]
  %v236 = vld [vmem:[%s4 + $0x120] sm:$0xff]
  %v237 = vld [vmem:[%s4 + $0x128] sm:$0xff]
  %v238 = vld [vmem:[%s4 + $0x130] sm:$0xff]
  %v239 = vld [vmem:[%s4 + $0x138] sm:$0xff]
  %v240 = vld [vmem:[%s4 + $0x140] sm:$0xff]
  %v241 = vld [vmem:[%s4 + $0x148] sm:$0xff]
  %v242 = vld [vmem:[%s4 + $0x150] sm:$0xff]
  %v243 = vld [vmem:[%s4 + $0x158] sm:$0xff]
  %v244 = vld [vmem:[%s4 + $0x160] sm:$0xff]
  %v245 = vld [vmem:[%s4 + $0x168] sm:$0xff]
  %v246 = vld [vmem:[%s4 + $0x170] sm:$0xff]
  %v247 = vld [vmem:[%s4 + $0x178] sm:$0xff]
  %v248 = vld [vmem:[%s4 + $0x180] sm:$0xff]
  %v249 = vld [vmem:[%s4 + $0x188] sm:$0xff]
  %v250 = vld [vmem:[%s4 + $0x190] sm:$0xff]
  %v251 = vld [vmem:[%s4 + $0x198] sm:$0xff]
  %v252 = vld [vmem:[%s4 + $0x1a0] sm:$0xff]
  %v253 = vld [vmem:[%s4 + $0x1a8] sm:$0xff]
  %v254 = vld [vmem:[%s4 + $0x1b0] sm:$0xff]
  %v255 = vld [vmem:[%s4 + $0x1b8] sm:$0xff]
  %v256 = vld [vmem:[%s4 + $0x1c0] sm:$0xff]
  %v257 = vld [vmem:[%s4 + $0x1c8] sm:$0xff]
  %v258 = vld [vmem:[%s4 + $0x1d0] sm:$0xff]
  %v259 = vld [vmem:[%s4 + $0x1d8] sm:$0xff]
  %v260 = vld [vmem:[%s4 + $0x1e0] sm:$0xff]
  %v261 = vld [vmem:[%s4 + $0x1e8] sm:$0xff]
  %v262 = vld [vmem:[%s4 + $0x1f0] sm:$0xff]
  %v263 = vld [vmem:[%s4 + $0x1f8] sm:$0xff]
  %v264 = vld [vmem:[%s4 + $0x200] sm:$0xff]
  %v265 = vld [vmem:[%s4 + $0x208] sm:$0xff]
  %v266 = vld [vmem:[%s4 + $0x210] sm:$0xff]
  %v267 = vld [vmem:[%s4 + $0x218] sm:$0xff]
  %v268 = vld [vmem:[%s4 + $0x220] sm:$0xff]
  %v269 = vld [vmem:[%s4 + $0x228] sm:$0xff]
  %v270 = vld [vmem:[%s4 + $0x230] sm:$0xff]
  %v271 = vld [vmem:[%s4 + $0x238] sm:$0xff]
  %v272 = vld [vmem:[%s4 + $0x240] sm:$0xff]
  %v273 = vld [vmem:[%s4 + $0x248] sm:$0xff]
  %v274 = vld [vmem:[%s4 + $0x250] sm:$0xff]
  %v275 = vld [vmem:[%s4 + $0x258] sm:$0xff]
  %v276 = vld [vmem:[%s4 + $0x260] sm:$0xff]
  %v277 = vld [vmem:[%s4 + $0x268] sm:$0xff]
  %v278 = vld [vmem:[%s4 + $0x270] sm:$0xff]
  %v279 = vld [vmem:[%s4 + $0x278] sm:$0xff]
  %v280 = vld [vmem:[%s4 + $0x280] sm:$0xff]
  %v281 = vld [vmem:[%s4 + $0x288] sm:$0xff]
  %v282 = vld [vmem:[%s4 + $0x290] sm:$0xff]
  %v283 = vld [vmem:[%s4 + $0x298] sm:$0xff]
  %v284 = vld [vmem:[%s4 + $0x2a0] sm:$0xff]
  %v285 = vld [vmem:[%s4 + $0x2a8] sm:$0xff]
  %v286 = vld [vmem:[%s4 + $0x2b0] sm:$0xff]
  %v287 = vld [vmem:[%s4 + $0x2b8] sm:$0xff]
  %v288 = vld [vmem:[%s4 + $0x2c0] sm:$0xff]
  %v289 = vld [vmem:[%s4 + $0x2c8] sm:$0xff]
  %v290 = vld [vmem:[%s4 + $0x2d0] sm:$0xff]
  %v291 = vld [vmem:[%s4 + $0x2d8] sm:$0xff]
  %v292 = vld [vmem:[%s4 + $0x2e0] sm:$0xff]
  %v293 = vld [vmem:[%s4 + $0x2e8] sm:$0xff]
  %v294 = vld [vmem:[%s4 + $0x2f0] sm:$0xff]
  %v295 = vld [vmem:[%s4 + $0x2f8] sm:$0xff]
  %v296 = vld [vmem:[%s4 + $0x300] sm:$0xff]
  %v297 = vld [vmem:[%s4 + $0x308] sm:$0xff]
  %v298 = vld [vmem:[%s4 + $0x310] sm:$0xff]
  %v299 = vld [vmem:[%s4 + $0x318] sm:$0xff]
  %v300 = vld [vmem:[%s4 + $0x320] sm:$0xff]
  %v301 = vld [vmem:[%s4 + $0x328] sm:$0xff]
  %v302 = vld [vmem:[%s4 + $0x330] sm:$0xff]
  %v303 = vld [vmem:[%s4 + $0x338] sm:$0xff]
  %v304 = vld [vmem:[%s4 + $0x340] sm:$0xff]
  %v305 = vld [vmem:[%s4 + $0x348] sm:$0xff]
  %v306 = vld [vmem:[%s4 + $0x350] sm:$0xff]
  %v307 = vld [vmem:[%s4 + $0x358] sm:$0xff]
  %v308 = vld [vmem:[%s4 + $0x360] sm:$0xff]
  %v309 = vld [vmem:[%s4 + $0x368] sm:$0xff]
  %v310 = vld [vmem:[%s4 + $0x370] sm:$0xff]
  %v311 = vld [vmem:[%s4 + $0x378] sm:$0xff]
  %v312 = vld [vmem:[%s4 + $0x380] sm:$0xff]
  %v313 = vld [vmem:[%s4 + $0x388] sm:$0xff]
  %v314 = vld [vmem:[%s4 + $0x390] sm:$0xff]
  %v315 = vld [vmem:[%s4 + $0x398] sm:$0xff]
  %v316 = vld [vmem:[%s4 + $0x3a0] sm:$0xff]
  %v317 = vld [vmem:[%s4 + $0x3a8] sm:$0xff]
  %v318 = vld [vmem:[%s4 + $0x3b0] sm:$0xff]
  %v319 = vld [vmem:[%s4 + $0x3b8] sm:$0xff]
  %v320 = vld [vmem:[%s4 + $0x3c0] sm:$0xff]
  %v321 = vld [vmem:[%s4 + $0x3c8] sm:$0xff]
  %v322 = vld [vmem:[%s4 + $0x3d0] sm:$0xff]
  %v323 = vld [vmem:[%s4 + $0x3d8] sm:$0xff]
  %v324 = vld [vmem:[%s4 + $0x3e0] sm:$0xff]
  %v325 = vld [vmem:[%s4 + $0x3e8] sm:$0xff]
  %v326 = vld [vmem:[%s4 + $0x3f0] sm:$0xff]
  %v327 = vld [vmem:[%s4 + $0x3f8] sm:$0xff]
  %v328 = vld [vmem:[%s4 + $0x400] sm:$0xff]
  %v329 = vld [vmem:[%s4 + $0x408] sm:$0xff]
  %v330 = vld [vmem:[%s4 + $0x410] sm:$0xff]
  %v331 = vld [vmem:[%s4 + $0x418] sm:$0xff]
  %v332 = vld [vmem:[%s4 + $0x420] sm:$0xff]
  %v333 = vld [vmem:[%s4 + $0x428] sm:$0xff]
  %v334 = vld [vmem:[%s4 + $0x430] sm:$0xff]
  %v335 = vld [vmem:[%s4 + $0x438] sm:$0xff]
  %v336 = vld [vmem:[%s4 + $0x440] sm:$0xff]
  %v337 = vld [vmem:[%s4 + $0x448] sm:$0xff]
  %v338 = vld [vmem:[%s4 + $0x450] sm:$0xff]
  %v339 = vld [vmem:[%s4 + $0x458] sm:$0xff]
  %v340 = vld [vmem:[%s4 + $0x460] sm:$0xff]
  %v341 = vld [vmem:[%s4 + $0x468] sm:$0xff]
  %v342 = vld [vmem:[%s4 + $0x470] sm:$0xff]
  %v343 = vld [vmem:[%s4 + $0x478] sm:$0xff]
  %v344 = vld [vmem:[%s4 + $0x480] sm:$0xff]
  %v345 = vld [vmem:[%s4 + $0x488] sm:$0xff]
  %v346 = vld [vmem:[%s4 + $0x490] sm:$0xff]
  %v347 = vld [vmem:[%s4 + $0x498] sm:$0xff]
  %v348 = vld [vmem:[%s4 + $0x4a0] sm:$0xff]
  %v349 = vld [vmem:[%s4 + $0x4a8] sm:$0xff]
  %v350 = vld [vmem:[%s4 + $0x4b0] sm:$0xff]
  %v351 = vld [vmem:[%s4 + $0x4b8] sm:$0xff]
  %v352 = vld [vmem:[%s4 + $0x4c0] sm:$0xff]
  %v353 = vld [vmem:[%s4 + $0x4c8] sm:$0xff]
  %v354 = vld [vmem:[%s4 + $0x4d0] sm:$0xff]
  %v355 = vld [vmem:[%s4 + $0x4d8] sm:$0xff]
  %v356 = vld [vmem:[%s4 + $0x4e0] sm:$0xff]
  %v357 = vld [vmem:[%s4 + $0x4e8] sm:$0xff]
  %v358 = vld [vmem:[%s4 + $0x4f0] sm:$0xff]
  %v359 = vld [vmem:[%s4 + $0x4f8] sm:$0xff]
  %v360 = vld [vmem:[%s4 + $0x500] sm:$0xff]
  %v361 = vld [vmem:[%s4 + $0x508] sm:$0xff]
  %v362 = vld [vmem:[%s4 + $0x510] sm:$0xff]
  %v363 = vld [vmem:[%s4 + $0x518] sm:$0xff]
  %v364 = vld [vmem:[%s4 + $0x520] sm:$0xff]
  %v365 = vld [vmem:[%s4 + $0x528] sm:$0xff]
  %v366 = vld [vmem:[%s4 + $0x530] sm:$0xff]
  %v367 = vld [vmem:[%s4 + $0x538] sm:$0xff]
  %v368 = vld [vmem:[%s4 + $0x540] sm:$0xff]
  %v369 = vld [vmem:[%s4 + $0x548] sm:$0xff]
  %v370 = vld [vmem:[%s4 + $0x550] sm:$0xff]
  %v371 = vld [vmem:[%s4 + $0x558] sm:$0xff]
  %v372 = vld [vmem:[%s4 + $0x560] sm:$0xff]
  %v373 = vld [vmem:[%s4 + $0x568] sm:$0xff]
  %v374 = vld [vmem:[%s4 + $0x570] sm:$0xff]
  %v375 = vld [vmem:[%s4 + $0x578] sm:$0xff]
  %v376 = vld [vmem:[%s4 + $0x580] sm:$0xff]
  %v377 = vld [vmem:[%s4 + $0x588] sm:$0xff]
  %v378 = vld [vmem:[%s4 + $0x590] sm:$0xff]
  %v379 = vld [vmem:[%s4 + $0x598] sm:$0xff]
  %v380 = vld [vmem:[%s4 + $0x5a0] sm:$0x3f]
  %v381 = vld [vmem:[%s4 + $0x5a8] sm:$0x3f]
  %v382 = vld [vmem:[%s4 + $0x5b0] sm:$0x3f]
  %v384 = vcombine.high %v199, %v199
  %v386 = vunpack.c.l.s4 1983009808
  %v387 = vunpack.c.0.s8 %v386
  %v388 = vlaneseq
  %v389 = vshrl.u32 %v388, 7
  %v390 = vsub.s32 %v387, %v389
  %v391 = vrot.slane %v199, %v390
  %v393 = vunpack.c.l.s4 1983009808
  %v394 = vunpack.c.0.s8 %v393
  %v395 = vlaneseq
  %v396 = vshrl.u32 %v395, 7
  %v397 = vsub.s32 %v394, %v396
  %v398 = vrot.slane %v384, %v397
  %v399 = vcombine.high %v391, %v391
  %v400 = vcombine.high %v398, %v398
  %vm404 = vcmask 834560
  %v405 = vsel %vm404, %v400, 0
  %vm407 = vcmask 1045504
  %v409 = vsel %vm407, %v380, 0
  %v412 = vsel %vm407, %v381, 0
  %v415 = vsel %vm407, %v382, 0
  %417 = vmatprep.subr.mxu0 %v246
  %418 = vmatpush1.msra.mxu0 %v245
  %419 = vmatprep.subr.mxu0 %v243
  %420 = vmatpush1.msra.mxu0 %v242
  %421 = vmatprep.subr.mxu0 %v240
  %422 = vmatpush1.msra.mxu0 %v239
  %423 = vmatprep.subr.mxu0 %v237
  %424 = vmatpush1.msra.mxu0 %v236
  %425 = vmatprep.subr.mxu0 %v234
  %426 = vmatpush1.msra.mxu0 %v233
  %427 = vmatprep.subr.mxu0 %v231
  %428 = vmatpush1.msra.mxu0 %v230
  %429 = vmatprep.subr.mxu0 %v228
  %430 = vmatpush1.msra.mxu0 %v227
  %431 = vmatprep.subr.mxu0 %v225
  %432 = vmatpush1.msra.mxu0 %v224
  %433 = vmatprep.subr.mxu0 %v222
  %434 = vmatpush1.msra.mxu0 %v221
  %435 = vmatprep.subr.mxu0 %v219
  %436 = vmatpush1.msra.mxu0 %v218
  %437 = vmatprep.subr.mxu0 %v216
  %438 = vmatpush1.msra.mxu0 %v215
  %439 = vmatprep.subr.mxu0 %v213
  %440 = vmatpush1.msra.mxu0 %v212
  %441 = vmatprep.subr.mxu0 %v210
  %442 = vmatpush1.msra.mxu0 %v209
  %443 = vmatprep.subr.mxu0 %v207
  %444 = vmatpush1.msra.mxu0 %v206
  %445 = vmatprep.subr.mxu0 %v204
  %446 = vmatpush1.msra.mxu0 %v203
  %447 = vmatprep.subr.mxu0 %v201
  %448 = vmatpush1.msra.mxu0 %v200
  %449 = vmatprep.subr.mxu0 %v294
  %450 = vmatpush2.msra.mxu0 %v293
  %451 = vmatprep.subr.mxu0 %v291
  %452 = vmatpush2.msra.mxu0 %v290
  %453 = vmatprep.subr.mxu0 %v288
  %454 = vmatpush2.msra.mxu0 %v287
  %455 = vmatprep.subr.mxu0 %v285
  %456 = vmatpush2.msra.mxu0 %v284
  %457 = vmatprep.subr.mxu0 %v282
  %458 = vmatpush2.msra.mxu0 %v281
  %459 = vmatprep.subr.mxu0 %v279
  %460 = vmatpush2.msra.mxu0 %v278
  %461 = vmatprep.subr.mxu0 %v276
  %462 = vmatpush2.msra.mxu0 %v275
  %463 = vmatprep.subr.mxu0 %v273
  %464 = vmatpush2.msra.mxu0 %v272
  %465 = vmatprep.subr.mxu0 %v270
  %466 = vmatpush2.msra.mxu0 %v269
  %467 = vmatprep.subr.mxu0 %v267
  %468 = vmatpush2.msra.mxu0 %v266
  %469 = vmatprep.subr.mxu0 %v264
  %470 = vmatpush2.msra.mxu0 %v263
  %471 = vmatprep.subr.mxu0 %v261
  %472 = vmatpush2.msra.mxu0 %v260
  %473 = vmatprep.subr.mxu0 %v258
  %474 = vmatpush2.msra.mxu0 %v257
  %475 = vmatprep.subr.mxu0 %v255
  %476 = vmatpush2.msra.mxu0 %v254
  %477 = vmatprep.subr.mxu0 %v252
  %478 = vmatpush2.msra.mxu0 %v251
  %479 = vmatprep.subr.mxu0 %v249
  %480 = vmatpush2.msra.mxu0 %v248
  %481 = vmatprep.mubr.f32.mxu0 %v399
  %482 = vmatmul.mubr.f32.gmra.mxu0 %v391
  %v483 = vpop.f32.mrf.mxu0
  %v484 = vadd.f32 0.0, %v483
  %v485 = vpop.f32.mrf.mxu0
  %v486 = vadd.f32 0.0, %v485
  %487 = vdwg.mxu0
  %488 = vmatprep.subr.mxu0 %v342
  %489 = vmatpush1.msra.mxu0 %v341
  %490 = vmatprep.subr.mxu0 %v339
  %491 = vmatpush1.msra.mxu0 %v338
  %492 = vmatprep.subr.mxu0 %v336
  %493 = vmatpush1.msra.mxu0 %v335
  %494 = vmatprep.subr.mxu0 %v333
  %495 = vmatpush1.msra.mxu0 %v332
  %496 = vmatprep.subr.mxu0 %v330
  %497 = vmatpush1.msra.mxu0 %v329
  %498 = vmatprep.subr.mxu0 %v327
  %499 = vmatpush1.msra.mxu0 %v326
  %500 = vmatprep.subr.mxu0 %v324
  %501 = vmatpush1.msra.mxu0 %v323
  %502 = vmatprep.subr.mxu0 %v321
  %503 = vmatpush1.msra.mxu0 %v320
  %504 = vmatprep.subr.mxu0 %v318
  %505 = vmatpush1.msra.mxu0 %v317
  %506 = vmatprep.subr.mxu0 %v315
  %507 = vmatpush1.msra.mxu0 %v314
  %508 = vmatprep.subr.mxu0 %v312
  %509 = vmatpush1.msra.mxu0 %v311
  %510 = vmatprep.subr.mxu0 %v309
  %511 = vmatpush1.msra.mxu0 %v308
  %512 = vmatprep.subr.mxu0 %v306
  %513 = vmatpush1.msra.mxu0 %v305
  %514 = vmatprep.subr.mxu0 %v303
  %515 = vmatpush1.msra.mxu0 %v302
  %516 = vmatprep.subr.mxu0 %v300
  %517 = vmatpush1.msra.mxu0 %v299
  %518 = vmatprep.subr.mxu0 %v297
  %519 = vmatpush1.msra.mxu0 %v296
  %520 = vmatprep.subr.mxu0 0.0
  %521 = vmatpush2.msra.mxu0 0.0
  %522 = vmatprep.subr.mxu0 0.0
  %523 = vmatpush2.msra.mxu0 0.0
  %524 = vmatprep.subr.mxu0 0.0
  %525 = vmatpush2.msra.mxu0 0.0
  %526 = vmatprep.subr.mxu0 %v412
  %527 = vmatpush2.msra.mxu0 %v409
  %528 = vmatprep.subr.mxu0 %v378
  %529 = vmatpush2.msra.mxu0 %v377
  %530 = vmatprep.subr.mxu0 %v375
  %531 = vmatpush2.msra.mxu0 %v374
  %532 = vmatprep.subr.mxu0 %v372
  %533 = vmatpush2.msra.mxu0 %v371
  %534 = vmatprep.subr.mxu0 %v369
  %535 = vmatpush2.msra.mxu0 %v368
  %536 = vmatprep.subr.mxu0 %v366
  %537 = vmatpush2.msra.mxu0 %v365
  %538 = vmatprep.subr.mxu0 %v363
  %539 = vmatpush2.msra.mxu0 %v362
  %540 = vmatprep.subr.mxu0 %v360
  %541 = vmatpush2.msra.mxu0 %v359
  %542 = vmatprep.subr.mxu0 %v357
  %543 = vmatpush2.msra.mxu0 %v356
  %544 = vmatprep.subr.mxu0 %v354
  %545 = vmatpush2.msra.mxu0 %v353
  %546 = vmatprep.subr.mxu0 %v351
  %547 = vmatpush2.msra.mxu0 %v350
  %548 = vmatprep.subr.mxu0 %v348
  %549 = vmatpush2.msra.mxu0 %v347
  %550 = vmatprep.subr.mxu0 %v345
  %551 = vmatpush2.msra.mxu0 %v344
  %552 = vmatprep.mubr.f32.mxu0 %v405
  %553 = vmatmul.mubr.f32.gmra.mxu0 %v398
  %v554 = vpop.f32.mrf.mxu0
  %v555 = vadd.f32 %v484, %v554
  %v556 = vpop.f32.mrf.mxu0
  %v557 = vadd.f32 %v486, %v556
  %558 = vdwg.mxu0
  %559 = vmatprep.subr.mxu0 0.0
  %560 = vmatpush1.msra.mxu0 %v247
  %561 = vmatprep.subr.mxu0 0.0
  %562 = vmatpush1.msra.mxu0 %v244
  %563 = vmatprep.subr.mxu0 0.0
  %564 = vmatpush1.msra.mxu0 %v241
  %565 = vmatprep.subr.mxu0 0.0
  %566 = vmatpush1.msra.mxu0 %v238
  %567 = vmatprep.subr.mxu0 0.0
  %568 = vmatpush1.msra.mxu0 %v235
  %569 = vmatprep.subr.mxu0 0.0
  %570 = vmatpush1.msra.mxu0 %v232
  %571 = vmatprep.subr.mxu0 0.0
  %572 = vmatpush1.msra.mxu0 %v229
  %573 = vmatprep.subr.mxu0 0.0
  %574 = vmatpush1.msra.mxu0 %v226
  %575 = vmatprep.subr.mxu0 0.0
  %576 = vmatpush1.msra.mxu0 %v223
  %577 = vmatprep.subr.mxu0 0.0
  %578 = vmatpush1.msra.mxu0 %v220
  %579 = vmatprep.subr.mxu0 0.0
  %580 = vmatpush1.msra.mxu0 %v217
  %581 = vmatprep.subr.mxu0 0.0
  %582 = vmatpush1.msra.mxu0 %v214
  %583 = vmatprep.subr.mxu0 0.0
  %584 = vmatpush1.msra.mxu0 %v211
  %585 = vmatprep.subr.mxu0 0.0
  %586 = vmatpush1.msra.mxu0 %v208
  %587 = vmatprep.subr.mxu0 0.0
  %588 = vmatpush1.msra.mxu0 %v205
  %589 = vmatprep.subr.mxu0 0.0
  %590 = vmatpush1.msra.mxu0 %v202
  %591 = vmatprep.subr.mxu0 0.0
  %592 = vmatpush2.msra.mxu0 %v295
  %593 = vmatprep.subr.mxu0 0.0
  %594 = vmatpush2.msra.mxu0 %v292
  %595 = vmatprep.subr.mxu0 0.0
  %596 = vmatpush2.msra.mxu0 %v289
  %597 = vmatprep.subr.mxu0 0.0
  %598 = vmatpush2.msra.mxu0 %v286
  %599 = vmatprep.subr.mxu0 0.0
  %600 = vmatpush2.msra.mxu0 %v283
  %601 = vmatprep.subr.mxu0 0.0
  %602 = vmatpush2.msra.mxu0 %v280
  %603 = vmatprep.subr.mxu0 0.0
  %604 = vmatpush2.msra.mxu0 %v277
  %605 = vmatprep.subr.mxu0 0.0
  %606 = vmatpush2.msra.mxu0 %v274
  %607 = vmatprep.subr.mxu0 0.0
  %608 = vmatpush2.msra.mxu0 %v271
  %609 = vmatprep.subr.mxu0 0.0
  %610 = vmatpush2.msra.mxu0 %v268
  %611 = vmatprep.subr.mxu0 0.0
  %612 = vmatpush2.msra.mxu0 %v265
  %613 = vmatprep.subr.mxu0 0.0
  %614 = vmatpush2.msra.mxu0 %v262
  %615 = vmatprep.subr.mxu0 0.0
  %616 = vmatpush2.msra.mxu0 %v259
  %617 = vmatprep.subr.mxu0 0.0
  %618 = vmatpush2.msra.mxu0 %v256
  %619 = vmatprep.subr.mxu0 0.0
  %620 = vmatpush2.msra.mxu0 %v253
  %621 = vmatprep.subr.mxu0 0.0
  %622 = vmatpush2.msra.mxu0 %v250
  %623 = vmatprep.mubr.f32.mxu0 %v399
  %624 = vmatmul.mubr.f32.gmra.mxu0 %v391
  %v625 = vpop.f32.mrf.mxu0
  %v626 = vadd.f32 0.0, %v625
  %v627 = vpop.f32.mrf.mxu0
  %628 = vdwg.mxu0
  %629 = vmatprep.subr.mxu0 0.0
  %630 = vmatpush1.msra.mxu0 %v343
  %631 = vmatprep.subr.mxu0 0.0
  %632 = vmatpush1.msra.mxu0 %v340
  %633 = vmatprep.subr.mxu0 0.0
  %634 = vmatpush1.msra.mxu0 %v337
  %635 = vmatprep.subr.mxu0 0.0
  %636 = vmatpush1.msra.mxu0 %v334
  %637 = vmatprep.subr.mxu0 0.0
  %638 = vmatpush1.msra.mxu0 %v331
  %639 = vmatprep.subr.mxu0 0.0
  %640 = vmatpush1.msra.mxu0 %v328
  %641 = vmatprep.subr.mxu0 0.0
  %642 = vmatpush1.msra.mxu0 %v325
  %643 = vmatprep.subr.mxu0 0.0
  %644 = vmatpush1.msra.mxu0 %v322
  %645 = vmatprep.subr.mxu0 0.0
  %646 = vmatpush1.msra.mxu0 %v319
  %647 = vmatprep.subr.mxu0 0.0
  %648 = vmatpush1.msra.mxu0 %v316
  %649 = vmatprep.subr.mxu0 0.0
  %650 = vmatpush1.msra.mxu0 %v313
  %651 = vmatprep.subr.mxu0 0.0
  %652 = vmatpush1.msra.mxu0 %v310
  %653 = vmatprep.subr.mxu0 0.0
  %654 = vmatpush1.msra.mxu0 %v307
  %655 = vmatprep.subr.mxu0 0.0
  %656 = vmatpush1.msra.mxu0 %v304
  %657 = vmatprep.subr.mxu0 0.0
  %658 = vmatpush1.msra.mxu0 %v301
  %659 = vmatprep.subr.mxu0 0.0
  %660 = vmatpush1.msra.mxu0 %v298
  %661 = vmatprep.subr.mxu0 0.0
  %662 = vmatpush2.msra.mxu0 0.0
  %663 = vmatprep.subr.mxu0 0.0
  %664 = vmatpush2.msra.mxu0 0.0
  %665 = vmatprep.subr.mxu0 0.0
  %666 = vmatpush2.msra.mxu0 0.0
  %667 = vmatprep.subr.mxu0 0.0
  %668 = vmatpush2.msra.mxu0 %v415
  %669 = vmatprep.subr.mxu0 0.0
  %670 = vmatpush2.msra.mxu0 %v379
  %671 = vmatprep.subr.mxu0 0.0
  %672 = vmatpush2.msra.mxu0 %v376
  %673 = vmatprep.subr.mxu0 0.0
  %674 = vmatpush2.msra.mxu0 %v373
  %675 = vmatprep.subr.mxu0 0.0
  %676 = vmatpush2.msra.mxu0 %v370
  %677 = vmatprep.subr.mxu0 0.0
  %678 = vmatpush2.msra.mxu0 %v367
  %679 = vmatprep.subr.mxu0 0.0
  %680 = vmatpush2.msra.mxu0 %v364
  %681 = vmatprep.subr.mxu0 0.0
  %682 = vmatpush2.msra.mxu0 %v361
  %683 = vmatprep.subr.mxu0 0.0
  %684 = vmatpush2.msra.mxu0 %v358
  %685 = vmatprep.subr.mxu0 0.0
  %686 = vmatpush2.msra.mxu0 %v355
  %687 = vmatprep.subr.mxu0 0.0
  %688 = vmatpush2.msra.mxu0 %v352
  %689 = vmatprep.subr.mxu0 0.0
  %690 = vmatpush2.msra.mxu0 %v349
  %691 = vmatprep.subr.mxu0 0.0
  %692 = vmatpush2.msra.mxu0 %v346
  %693 = vmatprep.mubr.f32.mxu0 %v405
  %694 = vmatmul.mubr.f32.gmra.mxu0 %v398
  %v695 = vpop.f32.mrf.mxu0
  %v696 = vadd.f32 %v626, %v695
  %v697 = vpop.f32.mrf.mxu0
  %698 = vdwg.mxu0
  %v699 = vadd.f32 %v125, %v555
  %v700 = vadd.f32 %v127, %v557
  %v701 = vadd.f32 %v196, %v696
  %v705 = vcombine.low %v699, %v700
  %v707 = vunpack.c.l.s4 1983009808
  %v708 = vunpack.c.0.s8 %v707
  %v709 = vlaneseq
  %v710 = vshrl.u32 %v709, 7
  %v711 = vsub.s32 %v708, %v710
  %v712 = vrot.slane %v705, %v711
  %v714 = vunpack.c.l.s4 1983009808
  %v715 = vunpack.c.0.s8 %v714
  %v716 = vlaneseq
  %v717 = vshrl.u32 %v716, 7
  %v718 = vsub.s32 %v715, %v717
  %v719 = vrot.slane %v701, %v718
  %v720 = vcombine.low %v712, %v719
  %722 = vst [vmem:[%s5] sm:$0x3f] %v720
  // Predicated region
  $region22: #{_lambda_.2} parent=0 // pred_check
    _
  $region23: #{_lambda_.2} parent=0 // pred_check_branch
    %724 = sbr.rel (0) target = $region25
  $region24: #{_lambda_.2} parent=0 // pred_region
    _
  $region25: #{_lambda_.2} parent=0 // pred_fallthru
    _
  // Predicated region
  $region26: #{_lambda_.2} parent=0 // pred_check
    _
  $region27: #{_lambda_.2} parent=0 // pred_check_branch
    %726 = sbr.rel (0) target = $region29
  $region28: #{_lambda_.2} parent=0 // pred_region
    _
  $region29: #{_lambda_.2} parent=0 // pred_fallthru
    _

</llo_original>
